<compile_context>
chip_gen: v6e
topology: v6e:2x2x1
jax: 0.10.0
libtpu: 0.0.40
codegen_flags: <defaults>
</compile_context>

<pallas_src>
import jax
import jax.numpy as jnp
from jax import lax
from jax.experimental import pallas as pl
from jax.experimental.pallas import tpu as pltpu


MATMUL_DTYPE = jnp.bfloat16  # MXU operand dtype; accumulation stays f32.


def _round_up(n, m):
    return ((n + m - 1) // m) * m


# ----------------------------------------------------------------------------
# Fused decoder kernel: L LSTM layers + Linear head, single invocation.
# ----------------------------------------------------------------------------
def _decoder_kernel(x_ref, wih_ref, whh_ref, b_ref, wout_ref, bout_ref,
                    o_ref, g_sc, act_sc):
    """
    x_ref:    (T, Bp, E)    f32   time-major input, batch padded to mult. of 8
    wih_ref:  (L, E, 4E)    bf16  W_ih^T per layer, gate cols (i, f, o, g)
    whh_ref:  (L, E, 4E)    bf16  W_hh^T per layer, same column order
    b_ref:    (L, 1, 4E)    f32   b_ih + b_hh, same column order
    wout_ref: (E, Opad)     bf16  head weight, zero-padded to 128-lane multiple
    bout_ref: (1, Opad)     f32   head bias (zero-padded)
    o_ref:    (T, Bp, Opad) f32   output (lane-dense store)
    g_sc:     (T, Bp, 4E)   f32   scratch: hoisted input projection
    act_sc:   (T, Bp, E)    f32   scratch: inter-layer activations (VMEM-resident)
    """
    T, Bp, E = x_ref.shape
    L = wih_ref.shape[0]
    unroll = T <= 16  # short, static trip count -> give LLO full visibility

    def run_layer(l, layer_in_2d):
        # Hoisted input projection: one large, MXU-shaped GEMM over T*Bp rows.
        g = jnp.dot(layer_in_2d, wih_ref[l],
                    preferred_element_type=jnp.float32) + b_ref[l]
        g_sc[...] = g.reshape(T, Bp, 4 * E)

        whh_l = whh_ref[l]  # (E, 4E) bf16, loaded once per layer (loop invariant)

        def step(t, carry):
            h, c = carry
            gates = g_sc[t] + jnp.dot(h.astype(MATMUL_DTYPE), whh_l,
                                      preferred_element_type=jnp.float32)
            # Gate columns are (i, f, o, g): one contiguous sigmoid stream for
            # (i, f, o) and one tanh for g; transcendentals kept in f32.
            sig = jax.nn.sigmoid(gates[:, :3 * E])
            g_t = jnp.tanh(gates[:, 3 * E:])
            i_g = sig[:, :E]
            f_g = sig[:, E:2 * E]
            o_g = sig[:, 2 * E:]
            c = f_g * c + i_g * g_t
            h = o_g * jnp.tanh(c)
            act_sc[t] = h
            return (h, c)

        h0 = jnp.zeros((Bp, E), jnp.float32)
        c0 = jnp.zeros((Bp, E), jnp.float32)
        lax.fori_loop(0, T, step, (h0, c0), unroll=unroll)

    # Layer 0 consumes the kernel input; later layers consume the VMEM-resident
    # activations of the previous layer (no HBM round trips between layers).
    layer_in = x_ref[...].astype(MATMUL_DTYPE).reshape(T * Bp, E)
    for l in range(L):
        run_layer(l, layer_in)
        if l + 1 < L:
            layer_in = act_sc[...].astype(MATMUL_DTYPE).reshape(T * Bp, E)

    # Fused Linear head over all T*Bp rows; Opad is a multiple of 128, so the
    # output store is a full, unmasked lane-dense vst.
    act2d = act_sc[...].astype(MATMUL_DTYPE).reshape(T * Bp, E)
    y = jnp.dot(act2d, wout_ref[...],
                preferred_element_type=jnp.float32) + bout_ref[...]
    o_ref[...] = y.reshape(T, Bp, o_ref.shape[-1])


# ----------------------------------------------------------------------------
# Decoder wrapper (weight prep + one pallas_call).
# ----------------------------------------------------------------------------
def decoder_forward(x_bte, lstm_params, out_w, out_b):
    """x_bte: (B, T, E) batch_first. Returns (B, T, output_dim)."""
    B, T, E = x_bte.shape
    L = len(lstm_params)
    Bp = _round_up(B, 8)                # sublane-aligned batch
    O = out_w.shape[0]
    Opad = _round_up(O, 128)            # lane-dense head output

    def reorder(w4e):
        # Permute the 4E gate axis (last axis) from (i, f, g, o) -> (i, f, o, g).
        i = w4e[..., 0 * E:1 * E]
        f = w4e[..., 1 * E:2 * E]
        g = w4e[..., 2 * E:3 * E]
        o = w4e[..., 3 * E:4 * E]
        return jnp.concatenate([i, f, o, g], axis=-1)

    wih_s = jnp.stack(
        [reorder(jnp.asarray(wih).T) for (wih, _, _, _) in lstm_params]
    ).astype(MATMUL_DTYPE)                                        # (L, E, 4E)
    whh_s = jnp.stack(
        [reorder(jnp.asarray(whh).T) for (_, whh, _, _) in lstm_params]
    ).astype(MATMUL_DTYPE)                                        # (L, E, 4E)
    b_s = jnp.stack(
        [reorder(bih + bhh).reshape(1, 4 * E) for (_, _, bih, bhh) in lstm_params]
    ).astype(jnp.float32)                                         # (L, 1, 4E)

    wout = jnp.zeros((E, Opad), jnp.float32).at[:, :O].set(out_w.T)
    wout = wout.astype(MATMUL_DTYPE)                              # (E, Opad)
    bout = jnp.zeros((1, Opad), jnp.float32).at[0, :O].set(out_b)  # (1, Opad)

    # Single input-prep pass: zero-pad batch to Bp and go time-major.
    x_p = jnp.zeros((Bp, T, E), jnp.float32).at[:B].set(x_bte)
    x_tm = jnp.swapaxes(x_p, 0, 1)                                # (T, Bp, E)

    fp32, bf16 = 4, 2
    vmem_needed = (T * Bp * E * fp32                 # x
                   + 2 * L * E * 4 * E * bf16        # W_ih^T + W_hh^T
                   + L * 4 * E * fp32                # bias
                   + E * Opad * bf16 + Opad * fp32   # head
                   + T * Bp * Opad * fp32            # output
                   + T * Bp * 4 * E * fp32           # g scratch
                   + T * Bp * E * fp32)              # act scratch
    vmem_limit = int(min(max(2 * vmem_needed, 4 * 1024 * 1024),
                         32 * 1024 * 1024))          # safe on v5e/v6e/v7x

    y_tm = pl.pallas_call(
        _decoder_kernel,
        out_shape=jax.ShapeDtypeStruct((T, Bp, Opad), jnp.float32),
        in_specs=[pl.BlockSpec(memory_space=pltpu.MemorySpace.VMEM)] * 6,
        out_specs=pl.BlockSpec(memory_space=pltpu.MemorySpace.VMEM),
        scratch_shapes=[
            pltpu.VMEM((T, Bp, 4 * E), jnp.float32),   # hoisted gates
            pltpu.VMEM((T, Bp, E), jnp.float32),       # inter-layer activations
        ],
        compiler_params=pltpu.CompilerParams(vmem_limit_bytes=vmem_limit),
    )(x_tm, wih_s, whh_s, b_s, wout, bout)

    # Single output-prep pass: back to batch_first, strip batch/output padding.
    return jnp.swapaxes(y_tm, 0, 1)[:B, :, :O]


# ----------------------------------------------------------------------------
# Pure-JAX f32 reference (PyTorch LSTM semantics) for correctness check.
# ----------------------------------------------------------------------------
def decoder_reference(x_bte, lstm_params, out_w, out_b):
    h_in = x_bte
    for (wih, whh, bih, bhh) in lstm_params:
        B, T, E = h_in.shape

        def step(carry, x_t):
            h, c = carry
            gates = x_t @ wih.T + bih + h @ whh.T + bhh
            i, f, g, o = jnp.split(gates, 4, axis=-1)
            c = jax.nn.sigmoid(f) * c + jax.nn.sigmoid(i) * jnp.tanh(g)
            h = jax.nn.sigmoid(o) * jnp.tanh(c)
            return (h, c), h

        h0 = jnp.zeros((B, E), jnp.float32)
        c0 = jnp.zeros((B, E), jnp.float32)
        _, hs = jax.lax.scan(step, (h0, c0), jnp.swapaxes(h_in, 0, 1))
        h_in = jnp.swapaxes(hs, 0, 1)
    return h_in @ out_w.T + out_b


# ----------------------------------------------------------------------------
# Deterministic parameter init (PyTorch-style uniform(-1/sqrt(E), 1/sqrt(E))).
# ----------------------------------------------------------------------------
def init_params(key, embedding_dim, output_dim, lstm_layers):
    E = embedding_dim
    bound = 1.0 / jnp.sqrt(jnp.float32(E))
    params = []
    for _ in range(lstm_layers):
        key, k1, k2, k3, k4 = jax.random.split(key, 5)
        wih = jax.random.uniform(k1, (4 * E, E), jnp.float32, -bound, bound)
        whh = jax.random.uniform(k2, (4 * E, E), jnp.float32, -bound, bound)
        bih = jax.random.uniform(k3, (4 * E,), jnp.float32, -bound, bound)
        bhh = jax.random.uniform(k4, (4 * E,), jnp.float32, -bound, bound)
        params.append((wih, whh, bih, bhh))
    key, k5, k6 = jax.random.split(key, 3)
    out_w = jax.random.uniform(k5, (output_dim, E), jnp.float32, -bound, bound)
    out_b = jax.random.uniform(k6, (output_dim,), jnp.float32, -bound, bound)
    return params, out_w, out_b


if __name__ == "__main__":
    B, T, E = 2, 8, 32          # batch, sequence length, embedding_dim
    OUTPUT_DIM = 16
    LSTM_LAYERS = 2
    # dropout = 0.0 (inter-layer dropout is a no-op in eval mode)

    key = jax.random.PRNGKey(0)
    key, kx = jax.random.split(key)
    x = jax.random.normal(kx, (B, T, E), dtype=jnp.float32)

    lstm_params, out_w, out_b = init_params(key, E, OUTPUT_DIM, LSTM_LAYERS)

    fwd = jax.jit(decoder_forward)
    y = jax.block_until_ready(fwd(x, lstm_params, out_w, out_b))
    y_ref = jax.block_until_ready(decoder_reference(x, lstm_params, out_w, out_b))

    assert y.shape == (B, T, OUTPUT_DIM), y.shape
    # bf16 MXU matmuls (f32 accumulation, f32 carries) vs. an all-f32 reference:
    # use a bf16-appropriate tolerance.
    max_err = float(jnp.max(jnp.abs(y - y_ref)))
    assert max_err < 3e-2, max_err

    print("KERNEL_OK")
</pallas_src>

<mosaic_0001>
module attributes {stable_mosaic.version = 11 : i64} {
  func.func @_decoder_kernel(%arg0: memref<8x8x32xf32, #tpu.memory_space<vmem>>, %arg1: memref<2x32x128xbf16, #tpu.memory_space<vmem>>, %arg2: memref<2x32x128xbf16, #tpu.memory_space<vmem>>, %arg3: memref<2x1x128xf32, #tpu.memory_space<vmem>>, %arg4: memref<32x128xbf16, #tpu.memory_space<vmem>>, %arg5: memref<1x128xf32, #tpu.memory_space<vmem>>, %arg6: memref<8x8x128xf32, #tpu.memory_space<vmem>>, %arg7: memref<8x8x128xf32, #tpu.memory_space<vmem>>, %arg8: memref<8x8x32xf32, #tpu.memory_space<vmem>>) attributes {dimension_semantics = [], scalar_prefetch = 0 : i64, scratch_operands = 2 : i64, tpu.core_type = #tpu.core_type<tc>} {
    %c0 = arith.constant 0 : index
    %c0_0 = arith.constant 0 : index
    %c0_1 = arith.constant 0 : index
    %0 = vector.load %arg0[%c0, %c0_0, %c0_1] : memref<8x8x32xf32, #tpu.memory_space<vmem>>, vector<8x8x32xf32>
    %1 = arith.truncf %0 : vector<8x8x32xf32> to vector<8x8x32xbf16>
    %2 = vector.shape_cast %1 : vector<8x8x32xbf16> to vector<64x32xbf16>
    %c0_2 = arith.constant 0 : index
    %c0_3 = arith.constant 0 : index
    %c0_4 = arith.constant 0 : index
    %3 = vector.load %arg1[%c0_2, %c0_3, %c0_4] : memref<2x32x128xbf16, #tpu.memory_space<vmem>>, vector<1x32x128xbf16>
    %4 = vector.shape_cast %3 : vector<1x32x128xbf16> to vector<32x128xbf16>
    %cst = arith.constant dense<0.000000e+00> : vector<64x128xf32>
    %5 = tpu.matmul %2, %4, %cst {dimension_numbers = #tpu.dot_dimension_numbers<[1], [0], [0], [1], [0, 0, 1, 1], [], []>} : vector<64x32xbf16>, vector<32x128xbf16>, vector<64x128xf32> -> vector<64x128xf32>
    %c0_5 = arith.constant 0 : index
    %c0_6 = arith.constant 0 : index
    %c0_7 = arith.constant 0 : index
    %6 = vector.load %arg3[%c0_5, %c0_6, %c0_7] : memref<2x1x128xf32, #tpu.memory_space<vmem>>, vector<1x1x128xf32>
    %7 = vector.shape_cast %6 : vector<1x1x128xf32> to vector<1x128xf32>
    %8 = vector.broadcast %7 : vector<1x128xf32> to vector<64x128xf32>
    %9 = arith.addf %5, %8 : vector<64x128xf32>
    %10 = vector.shape_cast %9 : vector<64x128xf32> to vector<8x8x128xf32>
    %c0_8 = arith.constant 0 : index
    %c0_9 = arith.constant 0 : index
    %c0_10 = arith.constant 0 : index
    %11 = vector.load %arg7[%c0_8, %c0_9, %c0_10] : memref<8x8x128xf32, #tpu.memory_space<vmem>>, vector<8x8x128xf32>
    tpu.vector_store %arg7[%c0_8, %c0_9, %c0_10], %10 {strides = array<i32>} : memref<8x8x128xf32, #tpu.memory_space<vmem>>, vector<8x8x128xf32>,
    %c0_11 = arith.constant 0 : index
    %c0_12 = arith.constant 0 : index
    %c0_13 = arith.constant 0 : index
    %12 = vector.load %arg2[%c0_11, %c0_12, %c0_13] : memref<2x32x128xbf16, #tpu.memory_space<vmem>>, vector<1x32x128xbf16>
    %13 = vector.shape_cast %12 : vector<1x32x128xbf16> to vector<32x128xbf16>
    %cst_14 = arith.constant 0.000000e+00 : f32
    %14 = vector.broadcast %cst_14 : f32 to vector<8x32xf32>
    %cst_15 = arith.constant 0.000000e+00 : f32
    %15 = vector.broadcast %cst_15 : f32 to vector<8x32xf32>
    %c0_i32 = arith.constant 0 : i32
    %16 = arith.index_cast %c0_i32 : i32 to index
    %c0_16 = arith.constant 0 : index
    %c0_17 = arith.constant 0 : index
    %17 = vector.load %arg7[%16, %c0_16, %c0_17] : memref<8x8x128xf32, #tpu.memory_space<vmem>>, vector<1x8x128xf32>
    %18 = vector.shape_cast %17 : vector<1x8x128xf32> to vector<8x128xf32>
    %19 = arith.truncf %14 : vector<8x32xf32> to vector<8x32xbf16>
    %cst_18 = arith.constant dense<0.000000e+00> : vector<8x128xf32>
    %20 = tpu.matmul %19, %13, %cst_18 {dimension_numbers = #tpu.dot_dimension_numbers<[1], [0], [0], [1], [0, 0, 1, 1], [], []>} : vector<8x32xbf16>, vector<32x128xbf16>, vector<8x128xf32> -> vector<8x128xf32>
    %21 = arith.addf %18, %20 : vector<8x128xf32>
    %22 = vector.extract_strided_slice %21 {offsets = [0, 0], sizes = [8, 96], strides = [1, 1]} : vector<8x128xf32> to vector<8x96xf32>
    %23 = arith.negf %22 : vector<8x96xf32>
    %24 = math.exp %23 : vector<8x96xf32>
    %cst_19 = arith.constant 1.000000e+00 : f32
    %25 = vector.broadcast %cst_19 : f32 to vector<8x96xf32>
    %26 = arith.addf %25, %24 : vector<8x96xf32>
    %27 = arith.divf %25, %26 : vector<8x96xf32>
    %28 = vector.extract_strided_slice %21 {offsets = [0, 96], sizes = [8, 32], strides = [1, 1]} : vector<8x128xf32> to vector<8x32xf32>
    %29 = math.tanh %28 : vector<8x32xf32>
    %30 = vector.extract_strided_slice %27 {offsets = [0, 0], sizes = [8, 32], strides = [1, 1]} : vector<8x96xf32> to vector<8x32xf32>
    %31 = vector.extract_strided_slice %27 {offsets = [0, 32], sizes = [8, 32], strides = [1, 1]} : vector<8x96xf32> to vector<8x32xf32>
    %32 = vector.extract_strided_slice %27 {offsets = [0, 64], sizes = [8, 32], strides = [1, 1]} : vector<8x96xf32> to vector<8x32xf32>
    %33 = arith.mulf %31, %15 : vector<8x32xf32>
    %34 = arith.mulf %30, %29 : vector<8x32xf32>
    %35 = arith.addf %33, %34 : vector<8x32xf32>
    %36 = math.tanh %35 : vector<8x32xf32>
    %37 = arith.mulf %32, %36 : vector<8x32xf32>
    %38 = arith.index_cast %c0_i32 : i32 to index
    %c0_20 = arith.constant 0 : index
    %c0_21 = arith.constant 0 : index
    %39 = vector.load %arg8[%38, %c0_20, %c0_21] : memref<8x8x32xf32, #tpu.memory_space<vmem>>, vector<1x8x32xf32>
    %40 = vector.shape_cast %39 : vector<1x8x32xf32> to vector<8x32xf32>
    %41 = vector.shape_cast %37 : vector<8x32xf32> to vector<1x8x32xf32>
    tpu.vector_store %arg8[%38, %c0_20, %c0_21], %41 {strides = array<i32>} : memref<8x8x32xf32, #tpu.memory_space<vmem>>, vector<1x8x32xf32>,
    %c1_i32 = arith.constant 1 : i32
    %42 = arith.index_cast %c1_i32 : i32 to index
    %c0_22 = arith.constant 0 : index
    %c0_23 = arith.constant 0 : index
    %43 = vector.load %arg7[%42, %c0_22, %c0_23] : memref<8x8x128xf32, #tpu.memory_space<vmem>>, vector<1x8x128xf32>
    %44 = vector.shape_cast %43 : vector<1x8x128xf32> to vector<8x128xf32>
    %45 = arith.truncf %37 : vector<8x32xf32> to vector<8x32xbf16>
    %cst_24 = arith.constant dense<0.000000e+00> : vector<8x128xf32>
    %46 = tpu.matmul %45, %13, %cst_24 {dimension_numbers = #tpu.dot_dimension_numbers<[1], [0], [0], [1], [0, 0, 1, 1], [], []>} : vector<8x32xbf16>, vector<32x128xbf16>, vector<8x128xf32> -> vector<8x128xf32>
    %47 = arith.addf %44, %46 : vector<8x128xf32>
    %48 = vector.extract_strided_slice %47 {offsets = [0, 0], sizes = [8, 96], strides = [1, 1]} : vector<8x128xf32> to vector<8x96xf32>
    %49 = arith.negf %48 : vector<8x96xf32>
    %50 = math.exp %49 : vector<8x96xf32>
    %cst_25 = arith.constant 1.000000e+00 : f32
    %51 = vector.broadcast %cst_25 : f32 to vector<8x96xf32>
    %52 = arith.addf %51, %50 : vector<8x96xf32>
    %53 = arith.divf %51, %52 : vector<8x96xf32>
    %54 = vector.extract_strided_slice %47 {offsets = [0, 96], sizes = [8, 32], strides = [1, 1]} : vector<8x128xf32> to vector<8x32xf32>
    %55 = math.tanh %54 : vector<8x32xf32>
    %56 = vector.extract_strided_slice %53 {offsets = [0, 0], sizes = [8, 32], strides = [1, 1]} : vector<8x96xf32> to vector<8x32xf32>
    %57 = vector.extract_strided_slice %53 {offsets = [0, 32], sizes = [8, 32], strides = [1, 1]} : vector<8x96xf32> to vector<8x32xf32>
    %58 = vector.extract_strided_slice %53 {offsets = [0, 64], sizes = [8, 32], strides = [1, 1]} : vector<8x96xf32> to vector<8x32xf32>
    %59 = arith.mulf %57, %35 : vector<8x32xf32>
    %60 = arith.mulf %56, %55 : vector<8x32xf32>
    %61 = arith.addf %59, %60 : vector<8x32xf32>
    %62 = math.tanh %61 : vector<8x32xf32>
    %63 = arith.mulf %58, %62 : vector<8x32xf32>
    %64 = arith.index_cast %c1_i32 : i32 to index
    %c0_26 = arith.constant 0 : index
    %c0_27 = arith.constant 0 : index
    %65 = vector.load %arg8[%64, %c0_26, %c0_27] : memref<8x8x32xf32, #tpu.memory_space<vmem>>, vector<1x8x32xf32>
    %66 = vector.shape_cast %65 : vector<1x8x32xf32> to vector<8x32xf32>
    %67 = vector.shape_cast %63 : vector<8x32xf32> to vector<1x8x32xf32>
    tpu.vector_store %arg8[%64, %c0_26, %c0_27], %67 {strides = array<i32>} : memref<8x8x32xf32, #tpu.memory_space<vmem>>, vector<1x8x32xf32>,
    %c2_i32 = arith.constant 2 : i32
    %68 = arith.index_cast %c2_i32 : i32 to index
    %c0_28 = arith.constant 0 : index
    %c0_29 = arith.constant 0 : index
    %69 = vector.load %arg7[%68, %c0_28, %c0_29] : memref<8x8x128xf32, #tpu.memory_space<vmem>>, vector<1x8x128xf32>
    %70 = vector.shape_cast %69 : vector<1x8x128xf32> to vector<8x128xf32>
    %71 = arith.truncf %63 : vector<8x32xf32> to vector<8x32xbf16>
    %cst_30 = arith.constant dense<0.000000e+00> : vector<8x128xf32>
    %72 = tpu.matmul %71, %13, %cst_30 {dimension_numbers = #tpu.dot_dimension_numbers<[1], [0], [0], [1], [0, 0, 1, 1], [], []>} : vector<8x32xbf16>, vector<32x128xbf16>, vector<8x128xf32> -> vector<8x128xf32>
    %73 = arith.addf %70, %72 : vector<8x128xf32>
    %74 = vector.extract_strided_slice %73 {offsets = [0, 0], sizes = [8, 96], strides = [1, 1]} : vector<8x128xf32> to vector<8x96xf32>
    %75 = arith.negf %74 : vector<8x96xf32>
    %76 = math.exp %75 : vector<8x96xf32>
    %cst_31 = arith.constant 1.000000e+00 : f32
    %77 = vector.broadcast %cst_31 : f32 to vector<8x96xf32>
    %78 = arith.addf %77, %76 : vector<8x96xf32>
    %79 = arith.divf %77, %78 : vector<8x96xf32>
    %80 = vector.extract_strided_slice %73 {offsets = [0, 96], sizes = [8, 32], strides = [1, 1]} : vector<8x128xf32> to vector<8x32xf32>
    %81 = math.tanh %80 : vector<8x32xf32>
    %82 = vector.extract_strided_slice %79 {offsets = [0, 0], sizes = [8, 32], strides = [1, 1]} : vector<8x96xf32> to vector<8x32xf32>
    %83 = vector.extract_strided_slice %79 {offsets = [0, 32], sizes = [8, 32], strides = [1, 1]} : vector<8x96xf32> to vector<8x32xf32>
    %84 = vector.extract_strided_slice %79 {offsets = [0, 64], sizes = [8, 32], strides = [1, 1]} : vector<8x96xf32> to vector<8x32xf32>
    %85 = arith.mulf %83, %61 : vector<8x32xf32>
    %86 = arith.mulf %82, %81 : vector<8x32xf32>
    %87 = arith.addf %85, %86 : vector<8x32xf32>
    %88 = math.tanh %87 : vector<8x32xf32>
    %89 = arith.mulf %84, %88 : vector<8x32xf32>
    %90 = arith.index_cast %c2_i32 : i32 to index
    %c0_32 = arith.constant 0 : index
    %c0_33 = arith.constant 0 : index
    %91 = vector.load %arg8[%90, %c0_32, %c0_33] : memref<8x8x32xf32, #tpu.memory_space<vmem>>, vector<1x8x32xf32>
    %92 = vector.shape_cast %91 : vector<1x8x32xf32> to vector<8x32xf32>
    %93 = vector.shape_cast %89 : vector<8x32xf32> to vector<1x8x32xf32>
    tpu.vector_store %arg8[%90, %c0_32, %c0_33], %93 {strides = array<i32>} : memref<8x8x32xf32, #tpu.memory_space<vmem>>, vector<1x8x32xf32>,
    %c3_i32 = arith.constant 3 : i32
    %94 = arith.index_cast %c3_i32 : i32 to index
    %c0_34 = arith.constant 0 : index
    %c0_35 = arith.constant 0 : index
    %95 = vector.load %arg7[%94, %c0_34, %c0_35] : memref<8x8x128xf32, #tpu.memory_space<vmem>>, vector<1x8x128xf32>
    %96 = vector.shape_cast %95 : vector<1x8x128xf32> to vector<8x128xf32>
    %97 = arith.truncf %89 : vector<8x32xf32> to vector<8x32xbf16>
    %cst_36 = arith.constant dense<0.000000e+00> : vector<8x128xf32>
    %98 = tpu.matmul %97, %13, %cst_36 {dimension_numbers = #tpu.dot_dimension_numbers<[1], [0], [0], [1], [0, 0, 1, 1], [], []>} : vector<8x32xbf16>, vector<32x128xbf16>, vector<8x128xf32> -> vector<8x128xf32>
    %99 = arith.addf %96, %98 : vector<8x128xf32>
    %100 = vector.extract_strided_slice %99 {offsets = [0, 0], sizes = [8, 96], strides = [1, 1]} : vector<8x128xf32> to vector<8x96xf32>
    %101 = arith.negf %100 : vector<8x96xf32>
    %102 = math.exp %101 : vector<8x96xf32>
    %cst_37 = arith.constant 1.000000e+00 : f32
    %103 = vector.broadcast %cst_37 : f32 to vector<8x96xf32>
    %104 = arith.addf %103, %102 : vector<8x96xf32>
    %105 = arith.divf %103, %104 : vector<8x96xf32>
    %106 = vector.extract_strided_slice %99 {offsets = [0, 96], sizes = [8, 32], strides = [1, 1]} : vector<8x128xf32> to vector<8x32xf32>
    %107 = math.tanh %106 : vector<8x32xf32>
    %108 = vector.extract_strided_slice %105 {offsets = [0, 0], sizes = [8, 32], strides = [1, 1]} : vector<8x96xf32> to vector<8x32xf32>
    %109 = vector.extract_strided_slice %105 {offsets = [0, 32], sizes = [8, 32], strides = [1, 1]} : vector<8x96xf32> to vector<8x32xf32>
    %110 = vector.extract_strided_slice %105 {offsets = [0, 64], sizes = [8, 32], strides = [1, 1]} : vector<8x96xf32> to vector<8x32xf32>
    %111 = arith.mulf %109, %87 : vector<8x32xf32>
    %112 = arith.mulf %108, %107 : vector<8x32xf32>
    %113 = arith.addf %111, %112 : vector<8x32xf32>
    %114 = math.tanh %113 : vector<8x32xf32>
    %115 = arith.mulf %110, %114 : vector<8x32xf32>
    %116 = arith.index_cast %c3_i32 : i32 to index
    %c0_38 = arith.constant 0 : index
    %c0_39 = arith.constant 0 : index
    %117 = vector.load %arg8[%116, %c0_38, %c0_39] : memref<8x8x32xf32, #tpu.memory_space<vmem>>, vector<1x8x32xf32>
    %118 = vector.shape_cast %117 : vector<1x8x32xf32> to vector<8x32xf32>
    %119 = vector.shape_cast %115 : vector<8x32xf32> to vector<1x8x32xf32>
    tpu.vector_store %arg8[%116, %c0_38, %c0_39], %119 {strides = array<i32>} : memref<8x8x32xf32, #tpu.memory_space<vmem>>, vector<1x8x32xf32>,
    %c4_i32 = arith.constant 4 : i32
    %120 = arith.index_cast %c4_i32 : i32 to index
    %c0_40 = arith.constant 0 : index
    %c0_41 = arith.constant 0 : index
    %121 = vector.load %arg7[%120, %c0_40, %c0_41] : memref<8x8x128xf32, #tpu.memory_space<vmem>>, vector<1x8x128xf32>
    %122 = vector.shape_cast %121 : vector<1x8x128xf32> to vector<8x128xf32>
    %123 = arith.truncf %115 : vector<8x32xf32> to vector<8x32xbf16>
    %cst_42 = arith.constant dense<0.000000e+00> : vector<8x128xf32>
    %124 = tpu.matmul %123, %13, %cst_42 {dimension_numbers = #tpu.dot_dimension_numbers<[1], [0], [0], [1], [0, 0, 1, 1], [], []>} : vector<8x32xbf16>, vector<32x128xbf16>, vector<8x128xf32> -> vector<8x128xf32>
    %125 = arith.addf %122, %124 : vector<8x128xf32>
    %126 = vector.extract_strided_slice %125 {offsets = [0, 0], sizes = [8, 96], strides = [1, 1]} : vector<8x128xf32> to vector<8x96xf32>
    %127 = arith.negf %126 : vector<8x96xf32>
    %128 = math.exp %127 : vector<8x96xf32>
    %cst_43 = arith.constant 1.000000e+00 : f32
    %129 = vector.broadcast %cst_43 : f32 to vector<8x96xf32>
    %130 = arith.addf %129, %128 : vector<8x96xf32>
    %131 = arith.divf %129, %130 : vector<8x96xf32>
    %132 = vector.extract_strided_slice %125 {offsets = [0, 96], sizes = [8, 32], strides = [1, 1]} : vector<8x128xf32> to vector<8x32xf32>
    %133 = math.tanh %132 : vector<8x32xf32>
    %134 = vector.extract_strided_slice %131 {offsets = [0, 0], sizes = [8, 32], strides = [1, 1]} : vector<8x96xf32> to vector<8x32xf32>
    %135 = vector.extract_strided_slice %131 {offsets = [0, 32], sizes = [8, 32], strides = [1, 1]} : vector<8x96xf32> to vector<8x32xf32>
    %136 = vector.extract_strided_slice %131 {offsets = [0, 64], sizes = [8, 32], strides = [1, 1]} : vector<8x96xf32> to vector<8x32xf32>
    %137 = arith.mulf %135, %113 : vector<8x32xf32>
    %138 = arith.mulf %134, %133 : vector<8x32xf32>
    %139 = arith.addf %137, %138 : vector<8x32xf32>
    %140 = math.tanh %139 : vector<8x32xf32>
    %141 = arith.mulf %136, %140 : vector<8x32xf32>
    %142 = arith.index_cast %c4_i32 : i32 to index
    %c0_44 = arith.constant 0 : index
    %c0_45 = arith.constant 0 : index
    %143 = vector.load %arg8[%142, %c0_44, %c0_45] : memref<8x8x32xf32, #tpu.memory_space<vmem>>, vector<1x8x32xf32>
    %144 = vector.shape_cast %143 : vector<1x8x32xf32> to vector<8x32xf32>
    %145 = vector.shape_cast %141 : vector<8x32xf32> to vector<1x8x32xf32>
    tpu.vector_store %arg8[%142, %c0_44, %c0_45], %145 {strides = array<i32>} : memref<8x8x32xf32, #tpu.memory_space<vmem>>, vector<1x8x32xf32>,
    %c5_i32 = arith.constant 5 : i32
    %146 = arith.index_cast %c5_i32 : i32 to index
    %c0_46 = arith.constant 0 : index
    %c0_47 = arith.constant 0 : index
    %147 = vector.load %arg7[%146, %c0_46, %c0_47] : memref<8x8x128xf32, #tpu.memory_space<vmem>>, vector<1x8x128xf32>
    %148 = vector.shape_cast %147 : vector<1x8x128xf32> to vector<8x128xf32>
    %149 = arith.truncf %141 : vector<8x32xf32> to vector<8x32xbf16>
    %cst_48 = arith.constant dense<0.000000e+00> : vector<8x128xf32>
    %150 = tpu.matmul %149, %13, %cst_48 {dimension_numbers = #tpu.dot_dimension_numbers<[1], [0], [0], [1], [0, 0, 1, 1], [], []>} : vector<8x32xbf16>, vector<32x128xbf16>, vector<8x128xf32> -> vector<8x128xf32>
    %151 = arith.addf %148, %150 : vector<8x128xf32>
    %152 = vector.extract_strided_slice %151 {offsets = [0, 0], sizes = [8, 96], strides = [1, 1]} : vector<8x128xf32> to vector<8x96xf32>
    %153 = arith.negf %152 : vector<8x96xf32>
    %154 = math.exp %153 : vector<8x96xf32>
    %cst_49 = arith.constant 1.000000e+00 : f32
    %155 = vector.broadcast %cst_49 : f32 to vector<8x96xf32>
    %156 = arith.addf %155, %154 : vector<8x96xf32>
    %157 = arith.divf %155, %156 : vector<8x96xf32>
    %158 = vector.extract_strided_slice %151 {offsets = [0, 96], sizes = [8, 32], strides = [1, 1]} : vector<8x128xf32> to vector<8x32xf32>
    %159 = math.tanh %158 : vector<8x32xf32>
    %160 = vector.extract_strided_slice %157 {offsets = [0, 0], sizes = [8, 32], strides = [1, 1]} : vector<8x96xf32> to vector<8x32xf32>
    %161 = vector.extract_strided_slice %157 {offsets = [0, 32], sizes = [8, 32], strides = [1, 1]} : vector<8x96xf32> to vector<8x32xf32>
    %162 = vector.extract_strided_slice %157 {offsets = [0, 64], sizes = [8, 32], strides = [1, 1]} : vector<8x96xf32> to vector<8x32xf32>
    %163 = arith.mulf %161, %139 : vector<8x32xf32>
    %164 = arith.mulf %160, %159 : vector<8x32xf32>
    %165 = arith.addf %163, %164 : vector<8x32xf32>
    %166 = math.tanh %165 : vector<8x32xf32>
    %167 = arith.mulf %162, %166 : vector<8x32xf32>
    %168 = arith.index_cast %c5_i32 : i32 to index
    %c0_50 = arith.constant 0 : index
    %c0_51 = arith.constant 0 : index
    %169 = vector.load %arg8[%168, %c0_50, %c0_51] : memref<8x8x32xf32, #tpu.memory_space<vmem>>, vector<1x8x32xf32>
    %170 = vector.shape_cast %169 : vector<1x8x32xf32> to vector<8x32xf32>
    %171 = vector.shape_cast %167 : vector<8x32xf32> to vector<1x8x32xf32>
    tpu.vector_store %arg8[%168, %c0_50, %c0_51], %171 {strides = array<i32>} : memref<8x8x32xf32, #tpu.memory_space<vmem>>, vector<1x8x32xf32>,
    %c6_i32 = arith.constant 6 : i32
    %172 = arith.index_cast %c6_i32 : i32 to index
    %c0_52 = arith.constant 0 : index
    %c0_53 = arith.constant 0 : index
    %173 = vector.load %arg7[%172, %c0_52, %c0_53] : memref<8x8x128xf32, #tpu.memory_space<vmem>>, vector<1x8x128xf32>
    %174 = vector.shape_cast %173 : vector<1x8x128xf32> to vector<8x128xf32>
    %175 = arith.truncf %167 : vector<8x32xf32> to vector<8x32xbf16>
    %cst_54 = arith.constant dense<0.000000e+00> : vector<8x128xf32>
    %176 = tpu.matmul %175, %13, %cst_54 {dimension_numbers = #tpu.dot_dimension_numbers<[1], [0], [0], [1], [0, 0, 1, 1], [], []>} : vector<8x32xbf16>, vector<32x128xbf16>, vector<8x128xf32> -> vector<8x128xf32>
    %177 = arith.addf %174, %176 : vector<8x128xf32>
    %178 = vector.extract_strided_slice %177 {offsets = [0, 0], sizes = [8, 96], strides = [1, 1]} : vector<8x128xf32> to vector<8x96xf32>
    %179 = arith.negf %178 : vector<8x96xf32>
    %180 = math.exp %179 : vector<8x96xf32>
    %cst_55 = arith.constant 1.000000e+00 : f32
    %181 = vector.broadcast %cst_55 : f32 to vector<8x96xf32>
    %182 = arith.addf %181, %180 : vector<8x96xf32>
    %183 = arith.divf %181, %182 : vector<8x96xf32>
    %184 = vector.extract_strided_slice %177 {offsets = [0, 96], sizes = [8, 32], strides = [1, 1]} : vector<8x128xf32> to vector<8x32xf32>
    %185 = math.tanh %184 : vector<8x32xf32>
    %186 = vector.extract_strided_slice %183 {offsets = [0, 0], sizes = [8, 32], strides = [1, 1]} : vector<8x96xf32> to vector<8x32xf32>
    %187 = vector.extract_strided_slice %183 {offsets = [0, 32], sizes = [8, 32], strides = [1, 1]} : vector<8x96xf32> to vector<8x32xf32>
    %188 = vector.extract_strided_slice %183 {offsets = [0, 64], sizes = [8, 32], strides = [1, 1]} : vector<8x96xf32> to vector<8x32xf32>
    %189 = arith.mulf %187, %165 : vector<8x32xf32>
    %190 = arith.mulf %186, %185 : vector<8x32xf32>
    %191 = arith.addf %189, %190 : vector<8x32xf32>
    %192 = math.tanh %191 : vector<8x32xf32>
    %193 = arith.mulf %188, %192 : vector<8x32xf32>
    %194 = arith.index_cast %c6_i32 : i32 to index
    %c0_56 = arith.constant 0 : index
    %c0_57 = arith.constant 0 : index
    %195 = vector.load %arg8[%194, %c0_56, %c0_57] : memref<8x8x32xf32, #tpu.memory_space<vmem>>, vector<1x8x32xf32>
    %196 = vector.shape_cast %195 : vector<1x8x32xf32> to vector<8x32xf32>
    %197 = vector.shape_cast %193 : vector<8x32xf32> to vector<1x8x32xf32>
    tpu.vector_store %arg8[%194, %c0_56, %c0_57], %197 {strides = array<i32>} : memref<8x8x32xf32, #tpu.memory_space<vmem>>, vector<1x8x32xf32>,
    %c7_i32 = arith.constant 7 : i32
    %198 = arith.index_cast %c7_i32 : i32 to index
    %c0_58 = arith.constant 0 : index
    %c0_59 = arith.constant 0 : index
    %199 = vector.load %arg7[%198, %c0_58, %c0_59] : memref<8x8x128xf32, #tpu.memory_space<vmem>>, vector<1x8x128xf32>
    %200 = vector.shape_cast %199 : vector<1x8x128xf32> to vector<8x128xf32>
    %201 = arith.truncf %193 : vector<8x32xf32> to vector<8x32xbf16>
    %cst_60 = arith.constant dense<0.000000e+00> : vector<8x128xf32>
    %202 = tpu.matmul %201, %13, %cst_60 {dimension_numbers = #tpu.dot_dimension_numbers<[1], [0], [0], [1], [0, 0, 1, 1], [], []>} : vector<8x32xbf16>, vector<32x128xbf16>, vector<8x128xf32> -> vector<8x128xf32>
    %203 = arith.addf %200, %202 : vector<8x128xf32>
    %204 = vector.extract_strided_slice %203 {offsets = [0, 0], sizes = [8, 96], strides = [1, 1]} : vector<8x128xf32> to vector<8x96xf32>
    %205 = arith.negf %204 : vector<8x96xf32>
    %206 = math.exp %205 : vector<8x96xf32>
    %cst_61 = arith.constant 1.000000e+00 : f32
    %207 = vector.broadcast %cst_61 : f32 to vector<8x96xf32>
    %208 = arith.addf %207, %206 : vector<8x96xf32>
    %209 = arith.divf %207, %208 : vector<8x96xf32>
    %210 = vector.extract_strided_slice %203 {offsets = [0, 96], sizes = [8, 32], strides = [1, 1]} : vector<8x128xf32> to vector<8x32xf32>
    %211 = math.tanh %210 : vector<8x32xf32>
    %212 = vector.extract_strided_slice %209 {offsets = [0, 0], sizes = [8, 32], strides = [1, 1]} : vector<8x96xf32> to vector<8x32xf32>
    %213 = vector.extract_strided_slice %209 {offsets = [0, 32], sizes = [8, 32], strides = [1, 1]} : vector<8x96xf32> to vector<8x32xf32>
    %214 = vector.extract_strided_slice %209 {offsets = [0, 64], sizes = [8, 32], strides = [1, 1]} : vector<8x96xf32> to vector<8x32xf32>
    %215 = arith.mulf %213, %191 : vector<8x32xf32>
    %216 = arith.mulf %212, %211 : vector<8x32xf32>
    %217 = arith.addf %215, %216 : vector<8x32xf32>
    %218 = math.tanh %217 : vector<8x32xf32>
    %219 = arith.mulf %214, %218 : vector<8x32xf32>
    %220 = arith.index_cast %c7_i32 : i32 to index
    %c0_62 = arith.constant 0 : index
    %c0_63 = arith.constant 0 : index
    %221 = vector.load %arg8[%220, %c0_62, %c0_63] : memref<8x8x32xf32, #tpu.memory_space<vmem>>, vector<1x8x32xf32>
    %222 = vector.shape_cast %221 : vector<1x8x32xf32> to vector<8x32xf32>
    %223 = vector.shape_cast %219 : vector<8x32xf32> to vector<1x8x32xf32>
    tpu.vector_store %arg8[%220, %c0_62, %c0_63], %223 {strides = array<i32>} : memref<8x8x32xf32, #tpu.memory_space<vmem>>, vector<1x8x32xf32>,
    %c8_i32 = arith.constant 8 : i32
    %c0_64 = arith.constant 0 : index
    %c0_65 = arith.constant 0 : index
    %c0_66 = arith.constant 0 : index
    %224 = vector.load %arg8[%c0_64, %c0_65, %c0_66] : memref<8x8x32xf32, #tpu.memory_space<vmem>>, vector<8x8x32xf32>
    %225 = arith.truncf %224 : vector<8x8x32xf32> to vector<8x8x32xbf16>
    %226 = vector.shape_cast %225 : vector<8x8x32xbf16> to vector<64x32xbf16>
    %c1 = arith.constant 1 : index
    %c0_67 = arith.constant 0 : index
    %c0_68 = arith.constant 0 : index
    %227 = vector.load %arg1[%c1, %c0_67, %c0_68] : memref<2x32x128xbf16, #tpu.memory_space<vmem>>, vector<1x32x128xbf16>
    %228 = vector.shape_cast %227 : vector<1x32x128xbf16> to vector<32x128xbf16>
    %cst_69 = arith.constant dense<0.000000e+00> : vector<64x128xf32>
    %229 = tpu.matmul %226, %228, %cst_69 {dimension_numbers = #tpu.dot_dimension_numbers<[1], [0], [0], [1], [0, 0, 1, 1], [], []>} : vector<64x32xbf16>, vector<32x128xbf16>, vector<64x128xf32> -> vector<64x128xf32>
    %c1_70 = arith.constant 1 : index
    %c0_71 = arith.constant 0 : index
    %c0_72 = arith.constant 0 : index
    %230 = vector.load %arg3[%c1_70, %c0_71, %c0_72] : memref<2x1x128xf32, #tpu.memory_space<vmem>>, vector<1x1x128xf32>
    %231 = vector.shape_cast %230 : vector<1x1x128xf32> to vector<1x128xf32>
    %232 = vector.broadcast %231 : vector<1x128xf32> to vector<64x128xf32>
    %233 = arith.addf %229, %232 : vector<64x128xf32>
    %234 = vector.shape_cast %233 : vector<64x128xf32> to vector<8x8x128xf32>
    %c0_73 = arith.constant 0 : index
    %c0_74 = arith.constant 0 : index
    %c0_75 = arith.constant 0 : index
    %235 = vector.load %arg7[%c0_73, %c0_74, %c0_75] : memref<8x8x128xf32, #tpu.memory_space<vmem>>, vector<8x8x128xf32>
    tpu.vector_store %arg7[%c0_73, %c0_74, %c0_75], %234 {strides = array<i32>} : memref<8x8x128xf32, #tpu.memory_space<vmem>>, vector<8x8x128xf32>,
    %c1_76 = arith.constant 1 : index
    %c0_77 = arith.constant 0 : index
    %c0_78 = arith.constant 0 : index
    %236 = vector.load %arg2[%c1_76, %c0_77, %c0_78] : memref<2x32x128xbf16, #tpu.memory_space<vmem>>, vector<1x32x128xbf16>
    %237 = vector.shape_cast %236 : vector<1x32x128xbf16> to vector<32x128xbf16>
    %cst_79 = arith.constant 0.000000e+00 : f32
    %238 = vector.broadcast %cst_79 : f32 to vector<8x32xf32>
    %cst_80 = arith.constant 0.000000e+00 : f32
    %239 = vector.broadcast %cst_80 : f32 to vector<8x32xf32>
    %c0_i32_81 = arith.constant 0 : i32
    %240 = arith.index_cast %c0_i32_81 : i32 to index
    %c0_82 = arith.constant 0 : index
    %c0_83 = arith.constant 0 : index
    %241 = vector.load %arg7[%240, %c0_82, %c0_83] : memref<8x8x128xf32, #tpu.memory_space<vmem>>, vector<1x8x128xf32>
    %242 = vector.shape_cast %241 : vector<1x8x128xf32> to vector<8x128xf32>
    %243 = arith.truncf %238 : vector<8x32xf32> to vector<8x32xbf16>
    %cst_84 = arith.constant dense<0.000000e+00> : vector<8x128xf32>
    %244 = tpu.matmul %243, %237, %cst_84 {dimension_numbers = #tpu.dot_dimension_numbers<[1], [0], [0], [1], [0, 0, 1, 1], [], []>} : vector<8x32xbf16>, vector<32x128xbf16>, vector<8x128xf32> -> vector<8x128xf32>
    %245 = arith.addf %242, %244 : vector<8x128xf32>
    %246 = vector.extract_strided_slice %245 {offsets = [0, 0], sizes = [8, 96], strides = [1, 1]} : vector<8x128xf32> to vector<8x96xf32>
    %247 = arith.negf %246 : vector<8x96xf32>
    %248 = math.exp %247 : vector<8x96xf32>
    %cst_85 = arith.constant 1.000000e+00 : f32
    %249 = vector.broadcast %cst_85 : f32 to vector<8x96xf32>
    %250 = arith.addf %249, %248 : vector<8x96xf32>
    %251 = arith.divf %249, %250 : vector<8x96xf32>
    %252 = vector.extract_strided_slice %245 {offsets = [0, 96], sizes = [8, 32], strides = [1, 1]} : vector<8x128xf32> to vector<8x32xf32>
    %253 = math.tanh %252 : vector<8x32xf32>
    %254 = vector.extract_strided_slice %251 {offsets = [0, 0], sizes = [8, 32], strides = [1, 1]} : vector<8x96xf32> to vector<8x32xf32>
    %255 = vector.extract_strided_slice %251 {offsets = [0, 32], sizes = [8, 32], strides = [1, 1]} : vector<8x96xf32> to vector<8x32xf32>
    %256 = vector.extract_strided_slice %251 {offsets = [0, 64], sizes = [8, 32], strides = [1, 1]} : vector<8x96xf32> to vector<8x32xf32>
    %257 = arith.mulf %255, %239 : vector<8x32xf32>
    %258 = arith.mulf %254, %253 : vector<8x32xf32>
    %259 = arith.addf %257, %258 : vector<8x32xf32>
    %260 = math.tanh %259 : vector<8x32xf32>
    %261 = arith.mulf %256, %260 : vector<8x32xf32>
    %262 = arith.index_cast %c0_i32_81 : i32 to index
    %c0_86 = arith.constant 0 : index
    %c0_87 = arith.constant 0 : index
    %263 = vector.load %arg8[%262, %c0_86, %c0_87] : memref<8x8x32xf32, #tpu.memory_space<vmem>>, vector<1x8x32xf32>
    %264 = vector.shape_cast %263 : vector<1x8x32xf32> to vector<8x32xf32>
    %265 = vector.shape_cast %261 : vector<8x32xf32> to vector<1x8x32xf32>
    tpu.vector_store %arg8[%262, %c0_86, %c0_87], %265 {strides = array<i32>} : memref<8x8x32xf32, #tpu.memory_space<vmem>>, vector<1x8x32xf32>,
    %c1_i32_88 = arith.constant 1 : i32
    %266 = arith.index_cast %c1_i32_88 : i32 to index
    %c0_89 = arith.constant 0 : index
    %c0_90 = arith.constant 0 : index
    %267 = vector.load %arg7[%266, %c0_89, %c0_90] : memref<8x8x128xf32, #tpu.memory_space<vmem>>, vector<1x8x128xf32>
    %268 = vector.shape_cast %267 : vector<1x8x128xf32> to vector<8x128xf32>
    %269 = arith.truncf %261 : vector<8x32xf32> to vector<8x32xbf16>
    %cst_91 = arith.constant dense<0.000000e+00> : vector<8x128xf32>
    %270 = tpu.matmul %269, %237, %cst_91 {dimension_numbers = #tpu.dot_dimension_numbers<[1], [0], [0], [1], [0, 0, 1, 1], [], []>} : vector<8x32xbf16>, vector<32x128xbf16>, vector<8x128xf32> -> vector<8x128xf32>
    %271 = arith.addf %268, %270 : vector<8x128xf32>
    %272 = vector.extract_strided_slice %271 {offsets = [0, 0], sizes = [8, 96], strides = [1, 1]} : vector<8x128xf32> to vector<8x96xf32>
    %273 = arith.negf %272 : vector<8x96xf32>
    %274 = math.exp %273 : vector<8x96xf32>
    %cst_92 = arith.constant 1.000000e+00 : f32
    %275 = vector.broadcast %cst_92 : f32 to vector<8x96xf32>
    %276 = arith.addf %275, %274 : vector<8x96xf32>
    %277 = arith.divf %275, %276 : vector<8x96xf32>
    %278 = vector.extract_strided_slice %271 {offsets = [0, 96], sizes = [8, 32], strides = [1, 1]} : vector<8x128xf32> to vector<8x32xf32>
    %279 = math.tanh %278 : vector<8x32xf32>
    %280 = vector.extract_strided_slice %277 {offsets = [0, 0], sizes = [8, 32], strides = [1, 1]} : vector<8x96xf32> to vector<8x32xf32>
    %281 = vector.extract_strided_slice %277 {offsets = [0, 32], sizes = [8, 32], strides = [1, 1]} : vector<8x96xf32> to vector<8x32xf32>
    %282 = vector.extract_strided_slice %277 {offsets = [0, 64], sizes = [8, 32], strides = [1, 1]} : vector<8x96xf32> to vector<8x32xf32>
    %283 = arith.mulf %281, %259 : vector<8x32xf32>
    %284 = arith.mulf %280, %279 : vector<8x32xf32>
    %285 = arith.addf %283, %284 : vector<8x32xf32>
    %286 = math.tanh %285 : vector<8x32xf32>
    %287 = arith.mulf %282, %286 : vector<8x32xf32>
    %288 = arith.index_cast %c1_i32_88 : i32 to index
    %c0_93 = arith.constant 0 : index
    %c0_94 = arith.constant 0 : index
    %289 = vector.load %arg8[%288, %c0_93, %c0_94] : memref<8x8x32xf32, #tpu.memory_space<vmem>>, vector<1x8x32xf32>
    %290 = vector.shape_cast %289 : vector<1x8x32xf32> to vector<8x32xf32>
    %291 = vector.shape_cast %287 : vector<8x32xf32> to vector<1x8x32xf32>
    tpu.vector_store %arg8[%288, %c0_93, %c0_94], %291 {strides = array<i32>} : memref<8x8x32xf32, #tpu.memory_space<vmem>>, vector<1x8x32xf32>,
    %c2_i32_95 = arith.constant 2 : i32
    %292 = arith.index_cast %c2_i32_95 : i32 to index
    %c0_96 = arith.constant 0 : index
    %c0_97 = arith.constant 0 : index
    %293 = vector.load %arg7[%292, %c0_96, %c0_97] : memref<8x8x128xf32, #tpu.memory_space<vmem>>, vector<1x8x128xf32>
    %294 = vector.shape_cast %293 : vector<1x8x128xf32> to vector<8x128xf32>
    %295 = arith.truncf %287 : vector<8x32xf32> to vector<8x32xbf16>
    %cst_98 = arith.constant dense<0.000000e+00> : vector<8x128xf32>
    %296 = tpu.matmul %295, %237, %cst_98 {dimension_numbers = #tpu.dot_dimension_numbers<[1], [0], [0], [1], [0, 0, 1, 1], [], []>} : vector<8x32xbf16>, vector<32x128xbf16>, vector<8x128xf32> -> vector<8x128xf32>
    %297 = arith.addf %294, %296 : vector<8x128xf32>
    %298 = vector.extract_strided_slice %297 {offsets = [0, 0], sizes = [8, 96], strides = [1, 1]} : vector<8x128xf32> to vector<8x96xf32>
    %299 = arith.negf %298 : vector<8x96xf32>
    %300 = math.exp %299 : vector<8x96xf32>
    %cst_99 = arith.constant 1.000000e+00 : f32
    %301 = vector.broadcast %cst_99 : f32 to vector<8x96xf32>
    %302 = arith.addf %301, %300 : vector<8x96xf32>
    %303 = arith.divf %301, %302 : vector<8x96xf32>
    %304 = vector.extract_strided_slice %297 {offsets = [0, 96], sizes = [8, 32], strides = [1, 1]} : vector<8x128xf32> to vector<8x32xf32>
    %305 = math.tanh %304 : vector<8x32xf32>
    %306 = vector.extract_strided_slice %303 {offsets = [0, 0], sizes = [8, 32], strides = [1, 1]} : vector<8x96xf32> to vector<8x32xf32>
    %307 = vector.extract_strided_slice %303 {offsets = [0, 32], sizes = [8, 32], strides = [1, 1]} : vector<8x96xf32> to vector<8x32xf32>
    %308 = vector.extract_strided_slice %303 {offsets = [0, 64], sizes = [8, 32], strides = [1, 1]} : vector<8x96xf32> to vector<8x32xf32>
    %309 = arith.mulf %307, %285 : vector<8x32xf32>
    %310 = arith.mulf %306, %305 : vector<8x32xf32>
    %311 = arith.addf %309, %310 : vector<8x32xf32>
    %312 = math.tanh %311 : vector<8x32xf32>
    %313 = arith.mulf %308, %312 : vector<8x32xf32>
    %314 = arith.index_cast %c2_i32_95 : i32 to index
    %c0_100 = arith.constant 0 : index
    %c0_101 = arith.constant 0 : index
    %315 = vector.load %arg8[%314, %c0_100, %c0_101] : memref<8x8x32xf32, #tpu.memory_space<vmem>>, vector<1x8x32xf32>
    %316 = vector.shape_cast %315 : vector<1x8x32xf32> to vector<8x32xf32>
    %317 = vector.shape_cast %313 : vector<8x32xf32> to vector<1x8x32xf32>
    tpu.vector_store %arg8[%314, %c0_100, %c0_101], %317 {strides = array<i32>} : memref<8x8x32xf32, #tpu.memory_space<vmem>>, vector<1x8x32xf32>,
    %c3_i32_102 = arith.constant 3 : i32
    %318 = arith.index_cast %c3_i32_102 : i32 to index
    %c0_103 = arith.constant 0 : index
    %c0_104 = arith.constant 0 : index
    %319 = vector.load %arg7[%318, %c0_103, %c0_104] : memref<8x8x128xf32, #tpu.memory_space<vmem>>, vector<1x8x128xf32>
    %320 = vector.shape_cast %319 : vector<1x8x128xf32> to vector<8x128xf32>
    %321 = arith.truncf %313 : vector<8x32xf32> to vector<8x32xbf16>
    %cst_105 = arith.constant dense<0.000000e+00> : vector<8x128xf32>
    %322 = tpu.matmul %321, %237, %cst_105 {dimension_numbers = #tpu.dot_dimension_numbers<[1], [0], [0], [1], [0, 0, 1, 1], [], []>} : vector<8x32xbf16>, vector<32x128xbf16>, vector<8x128xf32> -> vector<8x128xf32>
    %323 = arith.addf %320, %322 : vector<8x128xf32>
    %324 = vector.extract_strided_slice %323 {offsets = [0, 0], sizes = [8, 96], strides = [1, 1]} : vector<8x128xf32> to vector<8x96xf32>
    %325 = arith.negf %324 : vector<8x96xf32>
    %326 = math.exp %325 : vector<8x96xf32>
    %cst_106 = arith.constant 1.000000e+00 : f32
    %327 = vector.broadcast %cst_106 : f32 to vector<8x96xf32>
    %328 = arith.addf %327, %326 : vector<8x96xf32>
    %329 = arith.divf %327, %328 : vector<8x96xf32>
    %330 = vector.extract_strided_slice %323 {offsets = [0, 96], sizes = [8, 32], strides = [1, 1]} : vector<8x128xf32> to vector<8x32xf32>
    %331 = math.tanh %330 : vector<8x32xf32>
    %332 = vector.extract_strided_slice %329 {offsets = [0, 0], sizes = [8, 32], strides = [1, 1]} : vector<8x96xf32> to vector<8x32xf32>
    %333 = vector.extract_strided_slice %329 {offsets = [0, 32], sizes = [8, 32], strides = [1, 1]} : vector<8x96xf32> to vector<8x32xf32>
    %334 = vector.extract_strided_slice %329 {offsets = [0, 64], sizes = [8, 32], strides = [1, 1]} : vector<8x96xf32> to vector<8x32xf32>
    %335 = arith.mulf %333, %311 : vector<8x32xf32>
    %336 = arith.mulf %332, %331 : vector<8x32xf32>
    %337 = arith.addf %335, %336 : vector<8x32xf32>
    %338 = math.tanh %337 : vector<8x32xf32>
    %339 = arith.mulf %334, %338 : vector<8x32xf32>
    %340 = arith.index_cast %c3_i32_102 : i32 to index
    %c0_107 = arith.constant 0 : index
    %c0_108 = arith.constant 0 : index
    %341 = vector.load %arg8[%340, %c0_107, %c0_108] : memref<8x8x32xf32, #tpu.memory_space<vmem>>, vector<1x8x32xf32>
    %342 = vector.shape_cast %341 : vector<1x8x32xf32> to vector<8x32xf32>
    %343 = vector.shape_cast %339 : vector<8x32xf32> to vector<1x8x32xf32>
    tpu.vector_store %arg8[%340, %c0_107, %c0_108], %343 {strides = array<i32>} : memref<8x8x32xf32, #tpu.memory_space<vmem>>, vector<1x8x32xf32>,
    %c4_i32_109 = arith.constant 4 : i32
    %344 = arith.index_cast %c4_i32_109 : i32 to index
    %c0_110 = arith.constant 0 : index
    %c0_111 = arith.constant 0 : index
    %345 = vector.load %arg7[%344, %c0_110, %c0_111] : memref<8x8x128xf32, #tpu.memory_space<vmem>>, vector<1x8x128xf32>
    %346 = vector.shape_cast %345 : vector<1x8x128xf32> to vector<8x128xf32>
    %347 = arith.truncf %339 : vector<8x32xf32> to vector<8x32xbf16>
    %cst_112 = arith.constant dense<0.000000e+00> : vector<8x128xf32>
    %348 = tpu.matmul %347, %237, %cst_112 {dimension_numbers = #tpu.dot_dimension_numbers<[1], [0], [0], [1], [0, 0, 1, 1], [], []>} : vector<8x32xbf16>, vector<32x128xbf16>, vector<8x128xf32> -> vector<8x128xf32>
    %349 = arith.addf %346, %348 : vector<8x128xf32>
    %350 = vector.extract_strided_slice %349 {offsets = [0, 0], sizes = [8, 96], strides = [1, 1]} : vector<8x128xf32> to vector<8x96xf32>
    %351 = arith.negf %350 : vector<8x96xf32>
    %352 = math.exp %351 : vector<8x96xf32>
    %cst_113 = arith.constant 1.000000e+00 : f32
    %353 = vector.broadcast %cst_113 : f32 to vector<8x96xf32>
    %354 = arith.addf %353, %352 : vector<8x96xf32>
    %355 = arith.divf %353, %354 : vector<8x96xf32>
    %356 = vector.extract_strided_slice %349 {offsets = [0, 96], sizes = [8, 32], strides = [1, 1]} : vector<8x128xf32> to vector<8x32xf32>
    %357 = math.tanh %356 : vector<8x32xf32>
    %358 = vector.extract_strided_slice %355 {offsets = [0, 0], sizes = [8, 32], strides = [1, 1]} : vector<8x96xf32> to vector<8x32xf32>
    %359 = vector.extract_strided_slice %355 {offsets = [0, 32], sizes = [8, 32], strides = [1, 1]} : vector<8x96xf32> to vector<8x32xf32>
    %360 = vector.extract_strided_slice %355 {offsets = [0, 64], sizes = [8, 32], strides = [1, 1]} : vector<8x96xf32> to vector<8x32xf32>
    %361 = arith.mulf %359, %337 : vector<8x32xf32>
    %362 = arith.mulf %358, %357 : vector<8x32xf32>
    %363 = arith.addf %361, %362 : vector<8x32xf32>
    %364 = math.tanh %363 : vector<8x32xf32>
    %365 = arith.mulf %360, %364 : vector<8x32xf32>
    %366 = arith.index_cast %c4_i32_109 : i32 to index
    %c0_114 = arith.constant 0 : index
    %c0_115 = arith.constant 0 : index
    %367 = vector.load %arg8[%366, %c0_114, %c0_115] : memref<8x8x32xf32, #tpu.memory_space<vmem>>, vector<1x8x32xf32>
    %368 = vector.shape_cast %367 : vector<1x8x32xf32> to vector<8x32xf32>
    %369 = vector.shape_cast %365 : vector<8x32xf32> to vector<1x8x32xf32>
    tpu.vector_store %arg8[%366, %c0_114, %c0_115], %369 {strides = array<i32>} : memref<8x8x32xf32, #tpu.memory_space<vmem>>, vector<1x8x32xf32>,
    %c5_i32_116 = arith.constant 5 : i32
    %370 = arith.index_cast %c5_i32_116 : i32 to index
    %c0_117 = arith.constant 0 : index
    %c0_118 = arith.constant 0 : index
    %371 = vector.load %arg7[%370, %c0_117, %c0_118] : memref<8x8x128xf32, #tpu.memory_space<vmem>>, vector<1x8x128xf32>
    %372 = vector.shape_cast %371 : vector<1x8x128xf32> to vector<8x128xf32>
    %373 = arith.truncf %365 : vector<8x32xf32> to vector<8x32xbf16>
    %cst_119 = arith.constant dense<0.000000e+00> : vector<8x128xf32>
    %374 = tpu.matmul %373, %237, %cst_119 {dimension_numbers = #tpu.dot_dimension_numbers<[1], [0], [0], [1], [0, 0, 1, 1], [], []>} : vector<8x32xbf16>, vector<32x128xbf16>, vector<8x128xf32> -> vector<8x128xf32>
    %375 = arith.addf %372, %374 : vector<8x128xf32>
    %376 = vector.extract_strided_slice %375 {offsets = [0, 0], sizes = [8, 96], strides = [1, 1]} : vector<8x128xf32> to vector<8x96xf32>
    %377 = arith.negf %376 : vector<8x96xf32>
    %378 = math.exp %377 : vector<8x96xf32>
    %cst_120 = arith.constant 1.000000e+00 : f32
    %379 = vector.broadcast %cst_120 : f32 to vector<8x96xf32>
    %380 = arith.addf %379, %378 : vector<8x96xf32>
    %381 = arith.divf %379, %380 : vector<8x96xf32>
    %382 = vector.extract_strided_slice %375 {offsets = [0, 96], sizes = [8, 32], strides = [1, 1]} : vector<8x128xf32> to vector<8x32xf32>
    %383 = math.tanh %382 : vector<8x32xf32>
    %384 = vector.extract_strided_slice %381 {offsets = [0, 0], sizes = [8, 32], strides = [1, 1]} : vector<8x96xf32> to vector<8x32xf32>
    %385 = vector.extract_strided_slice %381 {offsets = [0, 32], sizes = [8, 32], strides = [1, 1]} : vector<8x96xf32> to vector<8x32xf32>
    %386 = vector.extract_strided_slice %381 {offsets = [0, 64], sizes = [8, 32], strides = [1, 1]} : vector<8x96xf32> to vector<8x32xf32>
    %387 = arith.mulf %385, %363 : vector<8x32xf32>
    %388 = arith.mulf %384, %383 : vector<8x32xf32>
    %389 = arith.addf %387, %388 : vector<8x32xf32>
    %390 = math.tanh %389 : vector<8x32xf32>
    %391 = arith.mulf %386, %390 : vector<8x32xf32>
    %392 = arith.index_cast %c5_i32_116 : i32 to index
    %c0_121 = arith.constant 0 : index
    %c0_122 = arith.constant 0 : index
    %393 = vector.load %arg8[%392, %c0_121, %c0_122] : memref<8x8x32xf32, #tpu.memory_space<vmem>>, vector<1x8x32xf32>
    %394 = vector.shape_cast %393 : vector<1x8x32xf32> to vector<8x32xf32>
    %395 = vector.shape_cast %391 : vector<8x32xf32> to vector<1x8x32xf32>
    tpu.vector_store %arg8[%392, %c0_121, %c0_122], %395 {strides = array<i32>} : memref<8x8x32xf32, #tpu.memory_space<vmem>>, vector<1x8x32xf32>,
    %c6_i32_123 = arith.constant 6 : i32
    %396 = arith.index_cast %c6_i32_123 : i32 to index
    %c0_124 = arith.constant 0 : index
    %c0_125 = arith.constant 0 : index
    %397 = vector.load %arg7[%396, %c0_124, %c0_125] : memref<8x8x128xf32, #tpu.memory_space<vmem>>, vector<1x8x128xf32>
    %398 = vector.shape_cast %397 : vector<1x8x128xf32> to vector<8x128xf32>
    %399 = arith.truncf %391 : vector<8x32xf32> to vector<8x32xbf16>
    %cst_126 = arith.constant dense<0.000000e+00> : vector<8x128xf32>
    %400 = tpu.matmul %399, %237, %cst_126 {dimension_numbers = #tpu.dot_dimension_numbers<[1], [0], [0], [1], [0, 0, 1, 1], [], []>} : vector<8x32xbf16>, vector<32x128xbf16>, vector<8x128xf32> -> vector<8x128xf32>
    %401 = arith.addf %398, %400 : vector<8x128xf32>
    %402 = vector.extract_strided_slice %401 {offsets = [0, 0], sizes = [8, 96], strides = [1, 1]} : vector<8x128xf32> to vector<8x96xf32>
    %403 = arith.negf %402 : vector<8x96xf32>
    %404 = math.exp %403 : vector<8x96xf32>
    %cst_127 = arith.constant 1.000000e+00 : f32
    %405 = vector.broadcast %cst_127 : f32 to vector<8x96xf32>
    %406 = arith.addf %405, %404 : vector<8x96xf32>
    %407 = arith.divf %405, %406 : vector<8x96xf32>
    %408 = vector.extract_strided_slice %401 {offsets = [0, 96], sizes = [8, 32], strides = [1, 1]} : vector<8x128xf32> to vector<8x32xf32>
    %409 = math.tanh %408 : vector<8x32xf32>
    %410 = vector.extract_strided_slice %407 {offsets = [0, 0], sizes = [8, 32], strides = [1, 1]} : vector<8x96xf32> to vector<8x32xf32>
    %411 = vector.extract_strided_slice %407 {offsets = [0, 32], sizes = [8, 32], strides = [1, 1]} : vector<8x96xf32> to vector<8x32xf32>
    %412 = vector.extract_strided_slice %407 {offsets = [0, 64], sizes = [8, 32], strides = [1, 1]} : vector<8x96xf32> to vector<8x32xf32>
    %413 = arith.mulf %411, %389 : vector<8x32xf32>
    %414 = arith.mulf %410, %409 : vector<8x32xf32>
    %415 = arith.addf %413, %414 : vector<8x32xf32>
    %416 = math.tanh %415 : vector<8x32xf32>
    %417 = arith.mulf %412, %416 : vector<8x32xf32>
    %418 = arith.index_cast %c6_i32_123 : i32 to index
    %c0_128 = arith.constant 0 : index
    %c0_129 = arith.constant 0 : index
    %419 = vector.load %arg8[%418, %c0_128, %c0_129] : memref<8x8x32xf32, #tpu.memory_space<vmem>>, vector<1x8x32xf32>
    %420 = vector.shape_cast %419 : vector<1x8x32xf32> to vector<8x32xf32>
    %421 = vector.shape_cast %417 : vector<8x32xf32> to vector<1x8x32xf32>
    tpu.vector_store %arg8[%418, %c0_128, %c0_129], %421 {strides = array<i32>} : memref<8x8x32xf32, #tpu.memory_space<vmem>>, vector<1x8x32xf32>,
    %c7_i32_130 = arith.constant 7 : i32
    %422 = arith.index_cast %c7_i32_130 : i32 to index
    %c0_131 = arith.constant 0 : index
    %c0_132 = arith.constant 0 : index
    %423 = vector.load %arg7[%422, %c0_131, %c0_132] : memref<8x8x128xf32, #tpu.memory_space<vmem>>, vector<1x8x128xf32>
    %424 = vector.shape_cast %423 : vector<1x8x128xf32> to vector<8x128xf32>
    %425 = arith.truncf %417 : vector<8x32xf32> to vector<8x32xbf16>
    %cst_133 = arith.constant dense<0.000000e+00> : vector<8x128xf32>
    %426 = tpu.matmul %425, %237, %cst_133 {dimension_numbers = #tpu.dot_dimension_numbers<[1], [0], [0], [1], [0, 0, 1, 1], [], []>} : vector<8x32xbf16>, vector<32x128xbf16>, vector<8x128xf32> -> vector<8x128xf32>
    %427 = arith.addf %424, %426 : vector<8x128xf32>
    %428 = vector.extract_strided_slice %427 {offsets = [0, 0], sizes = [8, 96], strides = [1, 1]} : vector<8x128xf32> to vector<8x96xf32>
    %429 = arith.negf %428 : vector<8x96xf32>
    %430 = math.exp %429 : vector<8x96xf32>
    %cst_134 = arith.constant 1.000000e+00 : f32
    %431 = vector.broadcast %cst_134 : f32 to vector<8x96xf32>
    %432 = arith.addf %431, %430 : vector<8x96xf32>
    %433 = arith.divf %431, %432 : vector<8x96xf32>
    %434 = vector.extract_strided_slice %427 {offsets = [0, 96], sizes = [8, 32], strides = [1, 1]} : vector<8x128xf32> to vector<8x32xf32>
    %435 = math.tanh %434 : vector<8x32xf32>
    %436 = vector.extract_strided_slice %433 {offsets = [0, 0], sizes = [8, 32], strides = [1, 1]} : vector<8x96xf32> to vector<8x32xf32>
    %437 = vector.extract_strided_slice %433 {offsets = [0, 32], sizes = [8, 32], strides = [1, 1]} : vector<8x96xf32> to vector<8x32xf32>
    %438 = vector.extract_strided_slice %433 {offsets = [0, 64], sizes = [8, 32], strides = [1, 1]} : vector<8x96xf32> to vector<8x32xf32>
    %439 = arith.mulf %437, %415 : vector<8x32xf32>
    %440 = arith.mulf %436, %435 : vector<8x32xf32>
    %441 = arith.addf %439, %440 : vector<8x32xf32>
    %442 = math.tanh %441 : vector<8x32xf32>
    %443 = arith.mulf %438, %442 : vector<8x32xf32>
    %444 = arith.index_cast %c7_i32_130 : i32 to index
    %c0_135 = arith.constant 0 : index
    %c0_136 = arith.constant 0 : index
    %445 = vector.load %arg8[%444, %c0_135, %c0_136] : memref<8x8x32xf32, #tpu.memory_space<vmem>>, vector<1x8x32xf32>
    %446 = vector.shape_cast %445 : vector<1x8x32xf32> to vector<8x32xf32>
    %447 = vector.shape_cast %443 : vector<8x32xf32> to vector<1x8x32xf32>
    tpu.vector_store %arg8[%444, %c0_135, %c0_136], %447 {strides = array<i32>} : memref<8x8x32xf32, #tpu.memory_space<vmem>>, vector<1x8x32xf32>,
    %c8_i32_137 = arith.constant 8 : i32
    %c0_138 = arith.constant 0 : index
    %c0_139 = arith.constant 0 : index
    %c0_140 = arith.constant 0 : index
    %448 = vector.load %arg8[%c0_138, %c0_139, %c0_140] : memref<8x8x32xf32, #tpu.memory_space<vmem>>, vector<8x8x32xf32>
    %449 = arith.truncf %448 : vector<8x8x32xf32> to vector<8x8x32xbf16>
    %450 = vector.shape_cast %449 : vector<8x8x32xbf16> to vector<64x32xbf16>
    %c0_141 = arith.constant 0 : index
    %c0_142 = arith.constant 0 : index
    %451 = vector.load %arg4[%c0_141, %c0_142] : memref<32x128xbf16, #tpu.memory_space<vmem>>, vector<32x128xbf16>
    %cst_143 = arith.constant dense<0.000000e+00> : vector<64x128xf32>
    %452 = tpu.matmul %450, %451, %cst_143 {dimension_numbers = #tpu.dot_dimension_numbers<[1], [0], [0], [1], [0, 0, 1, 1], [], []>} : vector<64x32xbf16>, vector<32x128xbf16>, vector<64x128xf32> -> vector<64x128xf32>
    %c0_144 = arith.constant 0 : index
    %c0_145 = arith.constant 0 : index
    %453 = vector.load %arg5[%c0_144, %c0_145] : memref<1x128xf32, #tpu.memory_space<vmem>>, vector<1x128xf32>
    %454 = vector.broadcast %453 : vector<1x128xf32> to vector<64x128xf32>
    %455 = arith.addf %452, %454 : vector<64x128xf32>
    %456 = vector.shape_cast %455 : vector<64x128xf32> to vector<8x8x128xf32>
    %c0_146 = arith.constant 0 : index
    %c0_147 = arith.constant 0 : index
    %c0_148 = arith.constant 0 : index
    %457 = vector.load %arg6[%c0_146, %c0_147, %c0_148] : memref<8x8x128xf32, #tpu.memory_space<vmem>>, vector<8x8x128xf32>
    tpu.vector_store %arg6[%c0_146, %c0_147, %c0_148], %456 {strides = array<i32>} : memref<8x8x128xf32, #tpu.memory_space<vmem>>, vector<8x8x128xf32>,
    return
  }
}

</mosaic_0001>

<llo_original>
// kernel: decoder_forward.1
$region0: #{decoder_forward.1}
  #allocation0 [shape = 'u32[]', space=smem, size = 0x4, offset = 0x4, fixed_abs, tag = 'smem constant byte address 0x4 - core index']
  #allocation1 [shape = 'u32[144,128]{1,0:T(1,128)}', space=vmem, size = 0x12000, scoped, tag = 'internal scratch']
  #allocation2 [shape = 'f32[8,8,128]{2,1,0:T(8,128)}', space=vmem, size = 0x8000, scoped, tag = 'scratch operand']
  #allocation3 [shape = 'f32[8,8,32]{2,1,0:T(8,128)}', space=vmem, size = 0x8000, scoped, tag = 'scratch operand']
  %s0 = inlined_call_operand.vmem [shape: f32[8,8,32], index: 0, kind: input, shape index: {}]
  %s1 = inlined_call_operand.vmem [shape: bf16[2,32,128], index: 1, kind: input, shape index: {}]
  %s2 = inlined_call_operand.vmem [shape: bf16[2,32,128], index: 2, kind: input, shape index: {}]
  %s3 = inlined_call_operand.vmem [shape: f32[2,1,128], index: 3, kind: input, shape index: {}]
  %s4 = inlined_call_operand.vmem [shape: bf16[32,128], index: 4, kind: input, shape index: {}]
  %s5 = inlined_call_operand.vmem [shape: f32[1,128], index: 5, kind: input, shape index: {}]
  %s6 = inlined_call_operand.vmem [shape: f32[8,8,128], index: 6, kind: output, shape index: {}]
  %s7 = sld [smem:[#allocation0]]
  $region34: #{decoder_forward.1} parent=0
    _
  %s9 = ssub.s32 1, %s7
  %s10 = scalar_select 0, %s9, %s7
  // Predicated region
  $region2: #{decoder_forward.1} parent=0 // pred_check
    _
  $region3: #{decoder_forward.1} parent=0 // pred_check_branch
    %12 = sbr.rel (0) target = $region5
  $region4: #{decoder_forward.1} parent=0 // pred_region
    _
  $region5: #{decoder_forward.1} parent=0 // pred_fallthru
    _
  // Predicated region
  $region6: #{decoder_forward.1} parent=0 // pred_check
    _
  $region7: #{decoder_forward.1} parent=0 // pred_check_branch
    %14 = sbr.rel (0) target = $region9
  $region8: #{decoder_forward.1} parent=0 // pred_region
    _
  $region9: #{decoder_forward.1} parent=0 // pred_fallthru
    _
  // Predicated region
  $region10: #{decoder_forward.1} parent=0 // pred_check
    _
  $region11: #{decoder_forward.1} parent=0 // pred_check_branch
    %16 = sbr.rel (0) target = $region13
  $region12: #{decoder_forward.1} parent=0 // pred_region
    _
  $region13: #{decoder_forward.1} parent=0 // pred_fallthru
    _
  // Predicated region
  $region14: #{decoder_forward.1} parent=0 // pred_check
    _
  $region15: #{decoder_forward.1} parent=0 // pred_check_branch
    %18 = sbr.rel (0) target = $region17
  $region16: #{decoder_forward.1} parent=0 // pred_region
    _
  $region17: #{decoder_forward.1} parent=0 // pred_fallthru
    _
  // Predicated region
  $region18: #{decoder_forward.1} parent=0 // pred_check
    _
  $region19: #{decoder_forward.1} parent=0 // pred_check_branch
    %20 = sbr.rel (0) target = $region21
  $region20: #{decoder_forward.1} parent=0 // pred_region
    _
  $region21: #{decoder_forward.1} parent=0 // pred_fallthru
    _
  // Predicated region
  $region22: #{decoder_forward.1} parent=0 // pred_check
    _
  $region23: #{decoder_forward.1} parent=0 // pred_check_branch
    %22 = sbr.rel (0) target = $region25
  $region24: #{decoder_forward.1} parent=0 // pred_region
    _
  $region25: #{decoder_forward.1} parent=0 // pred_fallthru
    _
  %v24 = vld [vmem:[%s0] sm:$0xff]
  %v25 = vld [vmem:[%s0 + $0x8] sm:$0xff]
  %v26 = vld [vmem:[%s0 + $0x10] sm:$0xff]
  %v27 = vld [vmem:[%s0 + $0x18] sm:$0xff]
  %v28 = vld [vmem:[%s0 + $0x20] sm:$0xff]
  %v29 = vld [vmem:[%s0 + $0x28] sm:$0xff]
  %v30 = vld [vmem:[%s0 + $0x30] sm:$0xff]
  %v31 = vld [vmem:[%s0 + $0x38] sm:$0xff]
  %v32 = vpack.c.bf16 %v24, %v24
  %v33 = vpack.c.bf16 %v25, %v25
  %v34 = vpack.c.bf16 %v26, %v26
  %v35 = vpack.c.bf16 %v27, %v27
  %v36 = vpack.c.bf16 %v28, %v28
  %v37 = vpack.c.bf16 %v29, %v29
  %v38 = vpack.c.bf16 %v30, %v30
  %v39 = vpack.c.bf16 %v31, %v31
  %v40 = vld [vmem:[%s1] sm:$0xf]
  %v41 = vld [vmem:[%s1 + $0x4] sm:$0xf]
  %v42 = vld [vmem:[%s1 + $0x8] sm:$0xf]
  %v43 = vld [vmem:[%s1 + $0xc] sm:$0xf]
  %v44 = vld [vmem:[%s3] sm:$0x1]
  %v46 = vlaneseq
  %v47 = vshrl.u32 %v46, 7
  %v48 = vsub.s32 0, %v47
  %v49 = vrot.slane %v44, %v48
  %v59 = vunpack.c.l.b16 %v32
  %v60 = vunpack.c.l.b16 %v33
  %v61 = vunpack.c.l.b16 %v34
  %v62 = vunpack.c.l.b16 %v35
  %v63 = vunpack.c.l.b16 %v36
  %v64 = vunpack.c.l.b16 %v37
  %v65 = vunpack.c.l.b16 %v38
  %v66 = vunpack.c.l.b16 %v39
  %v67 = vpack.c.b16 %v60, %v59
  %v68 = vpack.c.b16 %v62, %v61
  %v69 = vpack.c.b16 %v64, %v63
  %v70 = vpack.c.b16 %v66, %v65
  %v75 = vunpack.c.l.b16 %v40
  %v76 = vunpack.c.l.b16 %v41
  %v77 = vunpack.c.l.b16 %v42
  %v78 = vunpack.c.l.b16 %v43
  %v79 = vpack.c.b16 %v76, %v75
  %v80 = vpack.c.b16 %v78, %v77
  %vm83 = vcmask 261120
  %v85 = vsel %vm83, %v67, 0
  %v88 = vsel %vm83, %v68, 0
  %v91 = vsel %vm83, %v69, 0
  %v94 = vsel %vm83, %v70, 0
  %96 = vmatprep.subr.bf16.mxu0 0
  %97 = vmatpush1.bf16.msra.mxu0 0
  %98 = vmatprep.subr.bf16.mxu0 0
  %99 = vmatpush1.bf16.msra.mxu0 0
  %100 = vmatprep.subr.bf16.mxu0 0
  %101 = vmatpush1.bf16.msra.mxu0 0
  %102 = vmatprep.subr.bf16.mxu0 0
  %103 = vmatpush1.bf16.msra.mxu0 0
  %104 = vmatprep.subr.bf16.mxu0 0
  %105 = vmatpush1.bf16.msra.mxu0 0
  %106 = vmatprep.subr.bf16.mxu0 0
  %107 = vmatpush1.bf16.msra.mxu0 0
  %108 = vmatprep.subr.bf16.mxu0 0
  %109 = vmatpush1.bf16.msra.mxu0 %v80
  %110 = vmatprep.subr.bf16.mxu0 0
  %111 = vmatpush1.bf16.msra.mxu0 %v79
  %112 = vmatprep.subr.bf16.mxu0 0
  %113 = vmatpush2.bf16.msra.mxu0 0
  %114 = vmatprep.subr.bf16.mxu0 0
  %115 = vmatpush2.bf16.msra.mxu0 0
  %116 = vmatprep.subr.bf16.mxu0 0
  %117 = vmatpush2.bf16.msra.mxu0 0
  %118 = vmatprep.subr.bf16.mxu0 0
  %119 = vmatpush2.bf16.msra.mxu0 0
  %120 = vmatprep.subr.bf16.mxu0 0
  %121 = vmatpush2.bf16.msra.mxu0 0
  %122 = vmatprep.subr.bf16.mxu0 0
  %123 = vmatpush2.bf16.msra.mxu0 0
  %124 = vmatprep.subr.bf16.mxu0 0
  %125 = vmatpush2.bf16.msra.mxu0 0
  %126 = vmatprep.subr.bf16.mxu0 0
  %127 = vmatpush2.bf16.msra.mxu0 0
  %128 = vmatprep.mubr.bf16.mxu0 0
  %129 = vmatmul.mubr.bf16.gmra.mxu0 %v85
  %v130 = vpop.f32.mrf.mxu0
  %v131 = vadd.f32 %v49, %v130
  %v132 = vpop.f32.mrf.mxu0
  %v133 = vpop.f32.mrf.mxu0
  %v134 = vadd.f32 %v49, %v133
  %v135 = vpop.f32.mrf.mxu0
  %136 = vmatprep.mubr.bf16.mxu0 0
  %137 = vmatmul.mubr.bf16.gmra.mxu0 %v88
  %v138 = vpop.f32.mrf.mxu0
  %v139 = vadd.f32 %v49, %v138
  %v140 = vpop.f32.mrf.mxu0
  %v141 = vpop.f32.mrf.mxu0
  %v142 = vadd.f32 %v49, %v141
  %v143 = vpop.f32.mrf.mxu0
  %144 = vmatprep.mubr.bf16.mxu0 0
  %145 = vmatmul.mubr.bf16.gmra.mxu0 %v91
  %v146 = vpop.f32.mrf.mxu0
  %v147 = vadd.f32 %v49, %v146
  %v148 = vpop.f32.mrf.mxu0
  %v149 = vpop.f32.mrf.mxu0
  %v150 = vadd.f32 %v49, %v149
  %v151 = vpop.f32.mrf.mxu0
  %152 = vmatprep.mubr.bf16.mxu0 0
  %153 = vmatmul.mubr.bf16.gmra.mxu0 %v94
  %v154 = vpop.f32.mrf.mxu0
  %v155 = vadd.f32 %v49, %v154
  %v156 = vpop.f32.mrf.mxu0
  %v157 = vpop.f32.mrf.mxu0
  %v158 = vadd.f32 %v49, %v157
  %v159 = vpop.f32.mrf.mxu0
  %160 = vdwg.mxu0
  %161 = vst [vmem:[#allocation2] sm:$0xff] %v131
  %162 = vst [vmem:[#allocation2 + $0x8] sm:$0xff] %v134
  %163 = vst [vmem:[#allocation2 + $0x10] sm:$0xff] %v139
  %164 = vst [vmem:[#allocation2 + $0x18] sm:$0xff] %v142
  %165 = vst [vmem:[#allocation2 + $0x20] sm:$0xff] %v147
  %166 = vst [vmem:[#allocation2 + $0x28] sm:$0xff] %v150
  %167 = vst [vmem:[#allocation2 + $0x30] sm:$0xff] %v155
  %168 = vst [vmem:[#allocation2 + $0x38] sm:$0xff] %v158
  %v169 = vld [vmem:[%s2] sm:$0xf]
  %v170 = vld [vmem:[%s2 + $0x4] sm:$0xf]
  %v171 = vld [vmem:[%s2 + $0x8] sm:$0xf]
  %v172 = vld [vmem:[%s2 + $0xc] sm:$0xf]
  %v173 = vld [vmem:[#allocation2] sm:$0xff]
  %v178 = vunpack.c.l.b16 %v169
  %v179 = vunpack.c.l.b16 %v170
  %v180 = vunpack.c.l.b16 %v171
  %v181 = vunpack.c.l.b16 %v172
  %v182 = vpack.c.b16 %v179, %v178
  %v183 = vpack.c.b16 %v181, %v180
  %v187 = vsel %vm83, 0, 0
  %189 = vmatprep.subr.bf16.mxu0 0
  %190 = vmatpush1.bf16.msra.mxu0 0
  %191 = vmatprep.subr.bf16.mxu0 0
  %192 = vmatpush1.bf16.msra.mxu0 0
  %193 = vmatprep.subr.bf16.mxu0 0
  %194 = vmatpush1.bf16.msra.mxu0 0
  %195 = vmatprep.subr.bf16.mxu0 0
  %196 = vmatpush1.bf16.msra.mxu0 0
  %197 = vmatprep.subr.bf16.mxu0 0
  %198 = vmatpush1.bf16.msra.mxu0 0
  %199 = vmatprep.subr.bf16.mxu0 0
  %200 = vmatpush1.bf16.msra.mxu0 0
  %201 = vmatprep.subr.bf16.mxu0 0
  %202 = vmatpush1.bf16.msra.mxu0 %v183
  %203 = vmatprep.subr.bf16.mxu0 0
  %204 = vmatpush1.bf16.msra.mxu0 %v182
  %205 = vmatprep.subr.bf16.mxu0 0
  %206 = vmatpush2.bf16.msra.mxu0 0
  %207 = vmatprep.subr.bf16.mxu0 0
  %208 = vmatpush2.bf16.msra.mxu0 0
  %209 = vmatprep.subr.bf16.mxu0 0
  %210 = vmatpush2.bf16.msra.mxu0 0
  %211 = vmatprep.subr.bf16.mxu0 0
  %212 = vmatpush2.bf16.msra.mxu0 0
  %213 = vmatprep.subr.bf16.mxu0 0
  %214 = vmatpush2.bf16.msra.mxu0 0
  %215 = vmatprep.subr.bf16.mxu0 0
  %216 = vmatpush2.bf16.msra.mxu0 0
  %217 = vmatprep.subr.bf16.mxu0 0
  %218 = vmatpush2.bf16.msra.mxu0 0
  %219 = vmatprep.subr.bf16.mxu0 0
  %220 = vmatpush2.bf16.msra.mxu0 0
  %221 = vmatprep.mubr.bf16.mxu0 0
  %222 = vmatmul.mubr.bf16.gmra.mxu0 %v187
  %v223 = vpop.f32.mrf.mxu0
  %v224 = vadd.f32 0.0, %v223
  %v225 = vpop.f32.mrf.mxu0
  %v226 = vpop.f32.mrf.mxu0
  %v227 = vpop.f32.mrf.mxu0
  %228 = vdwg.mxu0
  %v229 = vadd.f32 %v173, %v224
  %v230 = vxor.u32 %v229, 2147483648
  %v231 = vmul.f32 %v230, 1.442695
  %v232 = vpow.pop %v231
  %v233 = vadd.f32 %v232, 1.0
  %v234 = vrcp.pop %v233
  %v235 = vmul.f32 1.0, %v234
  %v236 = vtanh.pop %v229
  %v237 = vmul.f32 %v235, 0.0
  %239 = vrot.lane.b32.xlu0 %v236, 32
  %v240 = vpop.permute.xlu0 %239
  %v242 = vmul.f32 %v235, %v240
  %244 = vrot.lane.b32.xlu0 %v242, 32
  %v245 = vpop.permute.xlu0 %244
  %v247 = vadd.f32 %v237, %v245
  %v248 = vtanh.pop %v247
  %250 = vrot.lane.b32.xlu0 %v248, 32
  %v251 = vpop.permute.xlu0 %250
  %v253 = vmul.f32 %v235, %v251
  %255 = vrot.lane.b32.xlu0 %v253, 64
  %v256 = vpop.permute.xlu0 %255
  %258 = vst.msk [vmem:[#allocation3] sm:$0xff] %vm83, %v256
  %s259 = scalar_lea.vmem [#allocation2], 8
  %v260 = vld [vmem:[%s259] sm:$0xff]
  %v261 = vpack.c.bf16 %v253, %v253
  %263 = vrot.lane.b32.xlu0 %v261, 64
  %v264 = vpop.permute.xlu0 %263
  %v266 = vsel %vm83, %v264, 0
  %268 = vmatprep.subr.bf16.mxu0 0
  %269 = vmatpush1.bf16.msra.mxu0 0
  %270 = vmatprep.subr.bf16.mxu0 0
  %271 = vmatpush1.bf16.msra.mxu0 0
  %272 = vmatprep.subr.bf16.mxu0 0
  %273 = vmatpush1.bf16.msra.mxu0 0
  %274 = vmatprep.subr.bf16.mxu0 0
  %275 = vmatpush1.bf16.msra.mxu0 0
  %276 = vmatprep.subr.bf16.mxu0 0
  %277 = vmatpush1.bf16.msra.mxu0 0
  %278 = vmatprep.subr.bf16.mxu0 0
  %279 = vmatpush1.bf16.msra.mxu0 0
  %280 = vmatprep.subr.bf16.mxu0 0
  %281 = vmatpush1.bf16.msra.mxu0 %v183
  %282 = vmatprep.subr.bf16.mxu0 0
  %283 = vmatpush1.bf16.msra.mxu0 %v182
  %284 = vmatprep.subr.bf16.mxu0 0
  %285 = vmatpush2.bf16.msra.mxu0 0
  %286 = vmatprep.subr.bf16.mxu0 0
  %287 = vmatpush2.bf16.msra.mxu0 0
  %288 = vmatprep.subr.bf16.mxu0 0
  %289 = vmatpush2.bf16.msra.mxu0 0
  %290 = vmatprep.subr.bf16.mxu0 0
  %291 = vmatpush2.bf16.msra.mxu0 0
  %292 = vmatprep.subr.bf16.mxu0 0
  %293 = vmatpush2.bf16.msra.mxu0 0
  %294 = vmatprep.subr.bf16.mxu0 0
  %295 = vmatpush2.bf16.msra.mxu0 0
  %296 = vmatprep.subr.bf16.mxu0 0
  %297 = vmatpush2.bf16.msra.mxu0 0
  %298 = vmatprep.subr.bf16.mxu0 0
  %299 = vmatpush2.bf16.msra.mxu0 0
  %300 = vmatprep.mubr.bf16.mxu0 0
  %301 = vmatmul.mubr.bf16.gmra.mxu0 %v266
  %v302 = vpop.f32.mrf.mxu0
  %v303 = vadd.f32 0.0, %v302
  %v304 = vpop.f32.mrf.mxu0
  %v305 = vpop.f32.mrf.mxu0
  %v306 = vpop.f32.mrf.mxu0
  %307 = vdwg.mxu0
  %v308 = vadd.f32 %v260, %v303
  %v309 = vxor.u32 %v308, 2147483648
  %v310 = vmul.f32 %v309, 1.442695
  %v311 = vpow.pop %v310
  %v312 = vadd.f32 %v311, 1.0
  %v313 = vrcp.pop %v312
  %v314 = vmul.f32 1.0, %v313
  %v315 = vtanh.pop %v308
  %v316 = vmul.f32 %v314, %v247
  %318 = vrot.lane.b32.xlu0 %v315, 32
  %v319 = vpop.permute.xlu0 %318
  %v321 = vmul.f32 %v314, %v319
  %323 = vrot.lane.b32.xlu0 %v321, 32
  %v324 = vpop.permute.xlu0 %323
  %v326 = vadd.f32 %v316, %v324
  %v327 = vtanh.pop %v326
  %329 = vrot.lane.b32.xlu0 %v327, 32
  %v330 = vpop.permute.xlu0 %329
  %v332 = vmul.f32 %v314, %v330
  %334 = vrot.lane.b32.xlu0 %v332, 64
  %v335 = vpop.permute.xlu0 %334
  %s337 = scalar_lea.vmem [#allocation3], 8
  %338 = vst.msk [vmem:[%s337] sm:$0xff] %vm83, %v335
  %s339 = scalar_lea.vmem [#allocation2], 16
  %v340 = vld [vmem:[%s339] sm:$0xff]
  %v341 = vpack.c.bf16 %v332, %v332
  %343 = vrot.lane.b32.xlu0 %v341, 64
  %v344 = vpop.permute.xlu0 %343
  %v346 = vsel %vm83, %v344, 0
  %348 = vmatprep.subr.bf16.mxu0 0
  %349 = vmatpush1.bf16.msra.mxu0 0
  %350 = vmatprep.subr.bf16.mxu0 0
  %351 = vmatpush1.bf16.msra.mxu0 0
  %352 = vmatprep.subr.bf16.mxu0 0
  %353 = vmatpush1.bf16.msra.mxu0 0
  %354 = vmatprep.subr.bf16.mxu0 0
  %355 = vmatpush1.bf16.msra.mxu0 0
  %356 = vmatprep.subr.bf16.mxu0 0
  %357 = vmatpush1.bf16.msra.mxu0 0
  %358 = vmatprep.subr.bf16.mxu0 0
  %359 = vmatpush1.bf16.msra.mxu0 0
  %360 = vmatprep.subr.bf16.mxu0 0
  %361 = vmatpush1.bf16.msra.mxu0 %v183
  %362 = vmatprep.subr.bf16.mxu0 0
  %363 = vmatpush1.bf16.msra.mxu0 %v182
  %364 = vmatprep.subr.bf16.mxu0 0
  %365 = vmatpush2.bf16.msra.mxu0 0
  %366 = vmatprep.subr.bf16.mxu0 0
  %367 = vmatpush2.bf16.msra.mxu0 0
  %368 = vmatprep.subr.bf16.mxu0 0
  %369 = vmatpush2.bf16.msra.mxu0 0
  %370 = vmatprep.subr.bf16.mxu0 0
  %371 = vmatpush2.bf16.msra.mxu0 0
  %372 = vmatprep.subr.bf16.mxu0 0
  %373 = vmatpush2.bf16.msra.mxu0 0
  %374 = vmatprep.subr.bf16.mxu0 0
  %375 = vmatpush2.bf16.msra.mxu0 0
  %376 = vmatprep.subr.bf16.mxu0 0
  %377 = vmatpush2.bf16.msra.mxu0 0
  %378 = vmatprep.subr.bf16.mxu0 0
  %379 = vmatpush2.bf16.msra.mxu0 0
  %380 = vmatprep.mubr.bf16.mxu0 0
  %381 = vmatmul.mubr.bf16.gmra.mxu0 %v346
  %v382 = vpop.f32.mrf.mxu0
  %v383 = vadd.f32 0.0, %v382
  %v384 = vpop.f32.mrf.mxu0
  %v385 = vpop.f32.mrf.mxu0
  %v386 = vpop.f32.mrf.mxu0
  %387 = vdwg.mxu0
  %v388 = vadd.f32 %v340, %v383
  %v389 = vxor.u32 %v388, 2147483648
  %v390 = vmul.f32 %v389, 1.442695
  %v391 = vpow.pop %v390
  %v392 = vadd.f32 %v391, 1.0
  %v393 = vrcp.pop %v392
  %v394 = vmul.f32 1.0, %v393
  %v395 = vtanh.pop %v388
  %v396 = vmul.f32 %v394, %v326
  %398 = vrot.lane.b32.xlu0 %v395, 32
  %v399 = vpop.permute.xlu0 %398
  %v401 = vmul.f32 %v394, %v399
  %403 = vrot.lane.b32.xlu0 %v401, 32
  %v404 = vpop.permute.xlu0 %403
  %v406 = vadd.f32 %v396, %v404
  %v407 = vtanh.pop %v406
  %409 = vrot.lane.b32.xlu0 %v407, 32
  %v410 = vpop.permute.xlu0 %409
  %v412 = vmul.f32 %v394, %v410
  %414 = vrot.lane.b32.xlu0 %v412, 64
  %v415 = vpop.permute.xlu0 %414
  %s417 = scalar_lea.vmem [#allocation3], 16
  %418 = vst.msk [vmem:[%s417] sm:$0xff] %vm83, %v415
  %s419 = scalar_lea.vmem [#allocation2], 24
  %v420 = vld [vmem:[%s419] sm:$0xff]
  %v421 = vpack.c.bf16 %v412, %v412
  %423 = vrot.lane.b32.xlu0 %v421, 64
  %v424 = vpop.permute.xlu0 %423
  %v426 = vsel %vm83, %v424, 0
  %428 = vmatprep.subr.bf16.mxu0 0
  %429 = vmatpush1.bf16.msra.mxu0 0
  %430 = vmatprep.subr.bf16.mxu0 0
  %431 = vmatpush1.bf16.msra.mxu0 0
  %432 = vmatprep.subr.bf16.mxu0 0
  %433 = vmatpush1.bf16.msra.mxu0 0
  %434 = vmatprep.subr.bf16.mxu0 0
  %435 = vmatpush1.bf16.msra.mxu0 0
  %436 = vmatprep.subr.bf16.mxu0 0
  %437 = vmatpush1.bf16.msra.mxu0 0
  %438 = vmatprep.subr.bf16.mxu0 0
  %439 = vmatpush1.bf16.msra.mxu0 0
  %440 = vmatprep.subr.bf16.mxu0 0
  %441 = vmatpush1.bf16.msra.mxu0 %v183
  %442 = vmatprep.subr.bf16.mxu0 0
  %443 = vmatpush1.bf16.msra.mxu0 %v182
  %444 = vmatprep.subr.bf16.mxu0 0
  %445 = vmatpush2.bf16.msra.mxu0 0
  %446 = vmatprep.subr.bf16.mxu0 0
  %447 = vmatpush2.bf16.msra.mxu0 0
  %448 = vmatprep.subr.bf16.mxu0 0
  %449 = vmatpush2.bf16.msra.mxu0 0
  %450 = vmatprep.subr.bf16.mxu0 0
  %451 = vmatpush2.bf16.msra.mxu0 0
  %452 = vmatprep.subr.bf16.mxu0 0
  %453 = vmatpush2.bf16.msra.mxu0 0
  %454 = vmatprep.subr.bf16.mxu0 0
  %455 = vmatpush2.bf16.msra.mxu0 0
  %456 = vmatprep.subr.bf16.mxu0 0
  %457 = vmatpush2.bf16.msra.mxu0 0
  %458 = vmatprep.subr.bf16.mxu0 0
  %459 = vmatpush2.bf16.msra.mxu0 0
  %460 = vmatprep.mubr.bf16.mxu0 0
  %461 = vmatmul.mubr.bf16.gmra.mxu0 %v426
  %v462 = vpop.f32.mrf.mxu0
  %v463 = vadd.f32 0.0, %v462
  %v464 = vpop.f32.mrf.mxu0
  %v465 = vpop.f32.mrf.mxu0
  %v466 = vpop.f32.mrf.mxu0
  %467 = vdwg.mxu0
  %v468 = vadd.f32 %v420, %v463
  %v469 = vxor.u32 %v468, 2147483648
  %v470 = vmul.f32 %v469, 1.442695
  %v471 = vpow.pop %v470
  %v472 = vadd.f32 %v471, 1.0
  %v473 = vrcp.pop %v472
  %v474 = vmul.f32 1.0, %v473
  %v475 = vtanh.pop %v468
  %v476 = vmul.f32 %v474, %v406
  %478 = vrot.lane.b32.xlu0 %v475, 32
  %v479 = vpop.permute.xlu0 %478
  %v481 = vmul.f32 %v474, %v479
  %483 = vrot.lane.b32.xlu0 %v481, 32
  %v484 = vpop.permute.xlu0 %483
  %v486 = vadd.f32 %v476, %v484
  %v487 = vtanh.pop %v486
  %489 = vrot.lane.b32.xlu0 %v487, 32
  %v490 = vpop.permute.xlu0 %489
  %v492 = vmul.f32 %v474, %v490
  %494 = vrot.lane.b32.xlu0 %v492, 64
  %v495 = vpop.permute.xlu0 %494
  %s497 = scalar_lea.vmem [#allocation3], 24
  %498 = vst.msk [vmem:[%s497] sm:$0xff] %vm83, %v495
  %s499 = scalar_lea.vmem [#allocation2], 32
  %v500 = vld [vmem:[%s499] sm:$0xff]
  %v501 = vpack.c.bf16 %v492, %v492
  %503 = vrot.lane.b32.xlu0 %v501, 64
  %v504 = vpop.permute.xlu0 %503
  %v506 = vsel %vm83, %v504, 0
  %508 = vmatprep.subr.bf16.mxu0 0
  %509 = vmatpush1.bf16.msra.mxu0 0
  %510 = vmatprep.subr.bf16.mxu0 0
  %511 = vmatpush1.bf16.msra.mxu0 0
  %512 = vmatprep.subr.bf16.mxu0 0
  %513 = vmatpush1.bf16.msra.mxu0 0
  %514 = vmatprep.subr.bf16.mxu0 0
  %515 = vmatpush1.bf16.msra.mxu0 0
  %516 = vmatprep.subr.bf16.mxu0 0
  %517 = vmatpush1.bf16.msra.mxu0 0
  %518 = vmatprep.subr.bf16.mxu0 0
  %519 = vmatpush1.bf16.msra.mxu0 0
  %520 = vmatprep.subr.bf16.mxu0 0
  %521 = vmatpush1.bf16.msra.mxu0 %v183
  %522 = vmatprep.subr.bf16.mxu0 0
  %523 = vmatpush1.bf16.msra.mxu0 %v182
  %524 = vmatprep.subr.bf16.mxu0 0
  %525 = vmatpush2.bf16.msra.mxu0 0
  %526 = vmatprep.subr.bf16.mxu0 0
  %527 = vmatpush2.bf16.msra.mxu0 0
  %528 = vmatprep.subr.bf16.mxu0 0
  %529 = vmatpush2.bf16.msra.mxu0 0
  %530 = vmatprep.subr.bf16.mxu0 0
  %531 = vmatpush2.bf16.msra.mxu0 0
  %532 = vmatprep.subr.bf16.mxu0 0
  %533 = vmatpush2.bf16.msra.mxu0 0
  %534 = vmatprep.subr.bf16.mxu0 0
  %535 = vmatpush2.bf16.msra.mxu0 0
  %536 = vmatprep.subr.bf16.mxu0 0
  %537 = vmatpush2.bf16.msra.mxu0 0
  %538 = vmatprep.subr.bf16.mxu0 0
  %539 = vmatpush2.bf16.msra.mxu0 0
  %540 = vmatprep.mubr.bf16.mxu0 0
  %541 = vmatmul.mubr.bf16.gmra.mxu0 %v506
  %v542 = vpop.f32.mrf.mxu0
  %v543 = vadd.f32 0.0, %v542
  %v544 = vpop.f32.mrf.mxu0
  %v545 = vpop.f32.mrf.mxu0
  %v546 = vpop.f32.mrf.mxu0
  %547 = vdwg.mxu0
  %v548 = vadd.f32 %v500, %v543
  %v549 = vxor.u32 %v548, 2147483648
  %v550 = vmul.f32 %v549, 1.442695
  %v551 = vpow.pop %v550
  %v552 = vadd.f32 %v551, 1.0
  %v553 = vrcp.pop %v552
  %v554 = vmul.f32 1.0, %v553
  %v555 = vtanh.pop %v548
  %v556 = vmul.f32 %v554, %v486
  %558 = vrot.lane.b32.xlu0 %v555, 32
  %v559 = vpop.permute.xlu0 %558
  %v561 = vmul.f32 %v554, %v559
  %563 = vrot.lane.b32.xlu0 %v561, 32
  %v564 = vpop.permute.xlu0 %563
  %v566 = vadd.f32 %v556, %v564
  %v567 = vtanh.pop %v566
  %569 = vrot.lane.b32.xlu0 %v567, 32
  %v570 = vpop.permute.xlu0 %569
  %v572 = vmul.f32 %v554, %v570
  %574 = vrot.lane.b32.xlu0 %v572, 64
  %v575 = vpop.permute.xlu0 %574
  %s577 = scalar_lea.vmem [#allocation3], 32
  %578 = vst.msk [vmem:[%s577] sm:$0xff] %vm83, %v575
  %s579 = scalar_lea.vmem [#allocation2], 40
  %v580 = vld [vmem:[%s579] sm:$0xff]
  %v581 = vpack.c.bf16 %v572, %v572
  %583 = vrot.lane.b32.xlu0 %v581, 64
  %v584 = vpop.permute.xlu0 %583
  %v586 = vsel %vm83, %v584, 0
  %588 = vmatprep.subr.bf16.mxu0 0
  %589 = vmatpush1.bf16.msra.mxu0 0
  %590 = vmatprep.subr.bf16.mxu0 0
  %591 = vmatpush1.bf16.msra.mxu0 0
  %592 = vmatprep.subr.bf16.mxu0 0
  %593 = vmatpush1.bf16.msra.mxu0 0
  %594 = vmatprep.subr.bf16.mxu0 0
  %595 = vmatpush1.bf16.msra.mxu0 0
  %596 = vmatprep.subr.bf16.mxu0 0
  %597 = vmatpush1.bf16.msra.mxu0 0
  %598 = vmatprep.subr.bf16.mxu0 0
  %599 = vmatpush1.bf16.msra.mxu0 0
  %600 = vmatprep.subr.bf16.mxu0 0
  %601 = vmatpush1.bf16.msra.mxu0 %v183
  %602 = vmatprep.subr.bf16.mxu0 0
  %603 = vmatpush1.bf16.msra.mxu0 %v182
  %604 = vmatprep.subr.bf16.mxu0 0
  %605 = vmatpush2.bf16.msra.mxu0 0
  %606 = vmatprep.subr.bf16.mxu0 0
  %607 = vmatpush2.bf16.msra.mxu0 0
  %608 = vmatprep.subr.bf16.mxu0 0
  %609 = vmatpush2.bf16.msra.mxu0 0
  %610 = vmatprep.subr.bf16.mxu0 0
  %611 = vmatpush2.bf16.msra.mxu0 0
  %612 = vmatprep.subr.bf16.mxu0 0
  %613 = vmatpush2.bf16.msra.mxu0 0
  %614 = vmatprep.subr.bf16.mxu0 0
  %615 = vmatpush2.bf16.msra.mxu0 0
  %616 = vmatprep.subr.bf16.mxu0 0
  %617 = vmatpush2.bf16.msra.mxu0 0
  %618 = vmatprep.subr.bf16.mxu0 0
  %619 = vmatpush2.bf16.msra.mxu0 0
  %620 = vmatprep.mubr.bf16.mxu0 0
  %621 = vmatmul.mubr.bf16.gmra.mxu0 %v586
  %v622 = vpop.f32.mrf.mxu0
  %v623 = vadd.f32 0.0, %v622
  %v624 = vpop.f32.mrf.mxu0
  %v625 = vpop.f32.mrf.mxu0
  %v626 = vpop.f32.mrf.mxu0
  %627 = vdwg.mxu0
  %v628 = vadd.f32 %v580, %v623
  %v629 = vxor.u32 %v628, 2147483648
  %v630 = vmul.f32 %v629, 1.442695
  %v631 = vpow.pop %v630
  %v632 = vadd.f32 %v631, 1.0
  %v633 = vrcp.pop %v632
  %v634 = vmul.f32 1.0, %v633
  %v635 = vtanh.pop %v628
  %v636 = vmul.f32 %v634, %v566
  %638 = vrot.lane.b32.xlu0 %v635, 32
  %v639 = vpop.permute.xlu0 %638
  %v641 = vmul.f32 %v634, %v639
  %643 = vrot.lane.b32.xlu0 %v641, 32
  %v644 = vpop.permute.xlu0 %643
  %v646 = vadd.f32 %v636, %v644
  %v647 = vtanh.pop %v646
  %649 = vrot.lane.b32.xlu0 %v647, 32
  %v650 = vpop.permute.xlu0 %649
  %v652 = vmul.f32 %v634, %v650
  %654 = vrot.lane.b32.xlu0 %v652, 64
  %v655 = vpop.permute.xlu0 %654
  %s657 = scalar_lea.vmem [#allocation3], 40
  %658 = vst.msk [vmem:[%s657] sm:$0xff] %vm83, %v655
  %s659 = scalar_lea.vmem [#allocation2], 48
  %v660 = vld [vmem:[%s659] sm:$0xff]
  %v661 = vpack.c.bf16 %v652, %v652
  %663 = vrot.lane.b32.xlu0 %v661, 64
  %v664 = vpop.permute.xlu0 %663
  %v666 = vsel %vm83, %v664, 0
  %668 = vmatprep.subr.bf16.mxu0 0
  %669 = vmatpush1.bf16.msra.mxu0 0
  %670 = vmatprep.subr.bf16.mxu0 0
  %671 = vmatpush1.bf16.msra.mxu0 0
  %672 = vmatprep.subr.bf16.mxu0 0
  %673 = vmatpush1.bf16.msra.mxu0 0
  %674 = vmatprep.subr.bf16.mxu0 0
  %675 = vmatpush1.bf16.msra.mxu0 0
  %676 = vmatprep.subr.bf16.mxu0 0
  %677 = vmatpush1.bf16.msra.mxu0 0
  %678 = vmatprep.subr.bf16.mxu0 0
  %679 = vmatpush1.bf16.msra.mxu0 0
  %680 = vmatprep.subr.bf16.mxu0 0
  %681 = vmatpush1.bf16.msra.mxu0 %v183
  %682 = vmatprep.subr.bf16.mxu0 0
  %683 = vmatpush1.bf16.msra.mxu0 %v182
  %684 = vmatprep.subr.bf16.mxu0 0
  %685 = vmatpush2.bf16.msra.mxu0 0
  %686 = vmatprep.subr.bf16.mxu0 0
  %687 = vmatpush2.bf16.msra.mxu0 0
  %688 = vmatprep.subr.bf16.mxu0 0
  %689 = vmatpush2.bf16.msra.mxu0 0
  %690 = vmatprep.subr.bf16.mxu0 0
  %691 = vmatpush2.bf16.msra.mxu0 0
  %692 = vmatprep.subr.bf16.mxu0 0
  %693 = vmatpush2.bf16.msra.mxu0 0
  %694 = vmatprep.subr.bf16.mxu0 0
  %695 = vmatpush2.bf16.msra.mxu0 0
  %696 = vmatprep.subr.bf16.mxu0 0
  %697 = vmatpush2.bf16.msra.mxu0 0
  %698 = vmatprep.subr.bf16.mxu0 0
  %699 = vmatpush2.bf16.msra.mxu0 0
  %700 = vmatprep.mubr.bf16.mxu0 0
  %701 = vmatmul.mubr.bf16.gmra.mxu0 %v666
  %v702 = vpop.f32.mrf.mxu0
  %v703 = vadd.f32 0.0, %v702
  %v704 = vpop.f32.mrf.mxu0
  %v705 = vpop.f32.mrf.mxu0
  %v706 = vpop.f32.mrf.mxu0
  %707 = vdwg.mxu0
  %v708 = vadd.f32 %v660, %v703
  %v709 = vxor.u32 %v708, 2147483648
  %v710 = vmul.f32 %v709, 1.442695
  %v711 = vpow.pop %v710
  %v712 = vadd.f32 %v711, 1.0
  %v713 = vrcp.pop %v712
  %v714 = vmul.f32 1.0, %v713
  %v715 = vtanh.pop %v708
  %v716 = vmul.f32 %v714, %v646
  %718 = vrot.lane.b32.xlu0 %v715, 32
  %v719 = vpop.permute.xlu0 %718
  %v721 = vmul.f32 %v714, %v719
  %723 = vrot.lane.b32.xlu0 %v721, 32
  %v724 = vpop.permute.xlu0 %723
  %v726 = vadd.f32 %v716, %v724
  %v727 = vtanh.pop %v726
  %729 = vrot.lane.b32.xlu0 %v727, 32
  %v730 = vpop.permute.xlu0 %729
  %v732 = vmul.f32 %v714, %v730
  %734 = vrot.lane.b32.xlu0 %v732, 64
  %v735 = vpop.permute.xlu0 %734
  %s737 = scalar_lea.vmem [#allocation3], 48
  %738 = vst.msk [vmem:[%s737] sm:$0xff] %vm83, %v735
  %s739 = scalar_lea.vmem [#allocation2], 56
  %v740 = vld [vmem:[%s739] sm:$0xff]
  %v741 = vpack.c.bf16 %v732, %v732
  %743 = vrot.lane.b32.xlu0 %v741, 64
  %v744 = vpop.permute.xlu0 %743
  %v746 = vsel %vm83, %v744, 0
  %748 = vmatprep.subr.bf16.mxu0 0
  %749 = vmatpush1.bf16.msra.mxu0 0
  %750 = vmatprep.subr.bf16.mxu0 0
  %751 = vmatpush1.bf16.msra.mxu0 0
  %752 = vmatprep.subr.bf16.mxu0 0
  %753 = vmatpush1.bf16.msra.mxu0 0
  %754 = vmatprep.subr.bf16.mxu0 0
  %755 = vmatpush1.bf16.msra.mxu0 0
  %756 = vmatprep.subr.bf16.mxu0 0
  %757 = vmatpush1.bf16.msra.mxu0 0
  %758 = vmatprep.subr.bf16.mxu0 0
  %759 = vmatpush1.bf16.msra.mxu0 0
  %760 = vmatprep.subr.bf16.mxu0 0
  %761 = vmatpush1.bf16.msra.mxu0 %v183
  %762 = vmatprep.subr.bf16.mxu0 0
  %763 = vmatpush1.bf16.msra.mxu0 %v182
  %764 = vmatprep.subr.bf16.mxu0 0
  %765 = vmatpush2.bf16.msra.mxu0 0
  %766 = vmatprep.subr.bf16.mxu0 0
  %767 = vmatpush2.bf16.msra.mxu0 0
  %768 = vmatprep.subr.bf16.mxu0 0
  %769 = vmatpush2.bf16.msra.mxu0 0
  %770 = vmatprep.subr.bf16.mxu0 0
  %771 = vmatpush2.bf16.msra.mxu0 0
  %772 = vmatprep.subr.bf16.mxu0 0
  %773 = vmatpush2.bf16.msra.mxu0 0
  %774 = vmatprep.subr.bf16.mxu0 0
  %775 = vmatpush2.bf16.msra.mxu0 0
  %776 = vmatprep.subr.bf16.mxu0 0
  %777 = vmatpush2.bf16.msra.mxu0 0
  %778 = vmatprep.subr.bf16.mxu0 0
  %779 = vmatpush2.bf16.msra.mxu0 0
  %780 = vmatprep.mubr.bf16.mxu0 0
  %781 = vmatmul.mubr.bf16.gmra.mxu0 %v746
  %v782 = vpop.f32.mrf.mxu0
  %v783 = vadd.f32 0.0, %v782
  %v784 = vpop.f32.mrf.mxu0
  %v785 = vpop.f32.mrf.mxu0
  %v786 = vpop.f32.mrf.mxu0
  %787 = vdwg.mxu0
  %v788 = vadd.f32 %v740, %v783
  %v789 = vxor.u32 %v788, 2147483648
  %v790 = vmul.f32 %v789, 1.442695
  %v791 = vpow.pop %v790
  %v792 = vadd.f32 %v791, 1.0
  %v793 = vrcp.pop %v792
  %v794 = vmul.f32 1.0, %v793
  %v795 = vtanh.pop %v788
  %v796 = vmul.f32 %v794, %v726
  %798 = vrot.lane.b32.xlu0 %v795, 32
  %v799 = vpop.permute.xlu0 %798
  %v801 = vmul.f32 %v794, %v799
  %803 = vrot.lane.b32.xlu0 %v801, 32
  %v804 = vpop.permute.xlu0 %803
  %v806 = vadd.f32 %v796, %v804
  %v807 = vtanh.pop %v806
  %809 = vrot.lane.b32.xlu0 %v807, 32
  %v810 = vpop.permute.xlu0 %809
  %v812 = vmul.f32 %v794, %v810
  %814 = vrot.lane.b32.xlu0 %v812, 64
  %v815 = vpop.permute.xlu0 %814
  %s817 = scalar_lea.vmem [#allocation3], 56
  %818 = vst.msk [vmem:[%s817] sm:$0xff] %vm83, %v815
  %v819 = vld [vmem:[#allocation3] sm:$0xff]
  %v820 = vld [vmem:[#allocation3 + $0x8] sm:$0xff]
  %v821 = vld [vmem:[#allocation3 + $0x10] sm:$0xff]
  %v822 = vld [vmem:[#allocation3 + $0x18] sm:$0xff]
  %v823 = vld [vmem:[#allocation3 + $0x20] sm:$0xff]
  %v824 = vld [vmem:[#allocation3 + $0x28] sm:$0xff]
  %v825 = vld [vmem:[#allocation3 + $0x30] sm:$0xff]
  %v826 = vld [vmem:[#allocation3 + $0x38] sm:$0xff]
  %v827 = vpack.c.bf16 %v819, %v819
  %v828 = vpack.c.bf16 %v820, %v820
  %v829 = vpack.c.bf16 %v821, %v821
  %v830 = vpack.c.bf16 %v822, %v822
  %v831 = vpack.c.bf16 %v823, %v823
  %v832 = vpack.c.bf16 %v824, %v824
  %v833 = vpack.c.bf16 %v825, %v825
  %v834 = vpack.c.bf16 %v826, %v826
  %s835 = scalar_lea.vmem %s1, 16
  %v836 = vld [vmem:[%s835] sm:$0xf]
  %v837 = vld [vmem:[%s835 + $0x4] sm:$0xf]
  %v838 = vld [vmem:[%s835 + $0x8] sm:$0xf]
  %v839 = vld [vmem:[%s835 + $0xc] sm:$0xf]
  %s840 = scalar_lea.vmem %s3, 1
  %v841 = vld [vmem:[%s840] sm:$0x1]
  %v843 = vlaneseq
  %v844 = vshrl.u32 %v843, 7
  %v845 = vsub.s32 0, %v844
  %v846 = vrot.slane %v841, %v845
  %v856 = vunpack.c.l.b16 %v827
  %v857 = vunpack.c.l.b16 %v828
  %v858 = vunpack.c.l.b16 %v829
  %v859 = vunpack.c.l.b16 %v830
  %v860 = vunpack.c.l.b16 %v831
  %v861 = vunpack.c.l.b16 %v832
  %v862 = vunpack.c.l.b16 %v833
  %v863 = vunpack.c.l.b16 %v834
  %v864 = vpack.c.b16 %v857, %v856
  %v865 = vpack.c.b16 %v859, %v858
  %v866 = vpack.c.b16 %v861, %v860
  %v867 = vpack.c.b16 %v863, %v862
  %v872 = vunpack.c.l.b16 %v836
  %v873 = vunpack.c.l.b16 %v837
  %v874 = vunpack.c.l.b16 %v838
  %v875 = vunpack.c.l.b16 %v839
  %v876 = vpack.c.b16 %v873, %v872
  %v877 = vpack.c.b16 %v875, %v874
  %v881 = vsel %vm83, %v864, 0
  %v884 = vsel %vm83, %v865, 0
  %v887 = vsel %vm83, %v866, 0
  %v890 = vsel %vm83, %v867, 0
  %892 = vmatprep.subr.bf16.mxu0 0
  %893 = vmatpush1.bf16.msra.mxu0 0
  %894 = vmatprep.subr.bf16.mxu0 0
  %895 = vmatpush1.bf16.msra.mxu0 0
  %896 = vmatprep.subr.bf16.mxu0 0
  %897 = vmatpush1.bf16.msra.mxu0 0
  %898 = vmatprep.subr.bf16.mxu0 0
  %899 = vmatpush1.bf16.msra.mxu0 0
  %900 = vmatprep.subr.bf16.mxu0 0
  %901 = vmatpush1.bf16.msra.mxu0 0
  %902 = vmatprep.subr.bf16.mxu0 0
  %903 = vmatpush1.bf16.msra.mxu0 0
  %904 = vmatprep.subr.bf16.mxu0 0
  %905 = vmatpush1.bf16.msra.mxu0 %v877
  %906 = vmatprep.subr.bf16.mxu0 0
  %907 = vmatpush1.bf16.msra.mxu0 %v876
  %908 = vmatprep.subr.bf16.mxu0 0
  %909 = vmatpush2.bf16.msra.mxu0 0
  %910 = vmatprep.subr.bf16.mxu0 0
  %911 = vmatpush2.bf16.msra.mxu0 0
  %912 = vmatprep.subr.bf16.mxu0 0
  %913 = vmatpush2.bf16.msra.mxu0 0
  %914 = vmatprep.subr.bf16.mxu0 0
  %915 = vmatpush2.bf16.msra.mxu0 0
  %916 = vmatprep.subr.bf16.mxu0 0
  %917 = vmatpush2.bf16.msra.mxu0 0
  %918 = vmatprep.subr.bf16.mxu0 0
  %919 = vmatpush2.bf16.msra.mxu0 0
  %920 = vmatprep.subr.bf16.mxu0 0
  %921 = vmatpush2.bf16.msra.mxu0 0
  %922 = vmatprep.subr.bf16.mxu0 0
  %923 = vmatpush2.bf16.msra.mxu0 0
  %924 = vmatprep.mubr.bf16.mxu0 0
  %925 = vmatmul.mubr.bf16.gmra.mxu0 %v881
  %v926 = vpop.f32.mrf.mxu0
  %v927 = vadd.f32 %v846, %v926
  %v928 = vpop.f32.mrf.mxu0
  %v929 = vpop.f32.mrf.mxu0
  %v930 = vadd.f32 %v846, %v929
  %v931 = vpop.f32.mrf.mxu0
  %932 = vmatprep.mubr.bf16.mxu0 0
  %933 = vmatmul.mubr.bf16.gmra.mxu0 %v884
  %v934 = vpop.f32.mrf.mxu0
  %v935 = vadd.f32 %v846, %v934
  %v936 = vpop.f32.mrf.mxu0
  %v937 = vpop.f32.mrf.mxu0
  %v938 = vadd.f32 %v846, %v937
  %v939 = vpop.f32.mrf.mxu0
  %940 = vmatprep.mubr.bf16.mxu0 0
  %941 = vmatmul.mubr.bf16.gmra.mxu0 %v887
  %v942 = vpop.f32.mrf.mxu0
  %v943 = vadd.f32 %v846, %v942
  %v944 = vpop.f32.mrf.mxu0
  %v945 = vpop.f32.mrf.mxu0
  %v946 = vadd.f32 %v846, %v945
  %v947 = vpop.f32.mrf.mxu0
  %948 = vmatprep.mubr.bf16.mxu0 0
  %949 = vmatmul.mubr.bf16.gmra.mxu0 %v890
  %v950 = vpop.f32.mrf.mxu0
  %v951 = vadd.f32 %v846, %v950
  %v952 = vpop.f32.mrf.mxu0
  %v953 = vpop.f32.mrf.mxu0
  %v954 = vadd.f32 %v846, %v953
  %v955 = vpop.f32.mrf.mxu0
  %956 = vdwg.mxu0
  %957 = vst [vmem:[#allocation2] sm:$0xff] %v927
  %958 = vst [vmem:[#allocation2 + $0x8] sm:$0xff] %v930
  %959 = vst [vmem:[#allocation2 + $0x10] sm:$0xff] %v935
  %960 = vst [vmem:[#allocation2 + $0x18] sm:$0xff] %v938
  %961 = vst [vmem:[#allocation2 + $0x20] sm:$0xff] %v943
  %962 = vst [vmem:[#allocation2 + $0x28] sm:$0xff] %v946
  %963 = vst [vmem:[#allocation2 + $0x30] sm:$0xff] %v951
  %964 = vst [vmem:[#allocation2 + $0x38] sm:$0xff] %v954
  %s965 = scalar_lea.vmem %s2, 16
  %v966 = vld [vmem:[%s965] sm:$0xf]
  %v967 = vld [vmem:[%s965 + $0x4] sm:$0xf]
  %v968 = vld [vmem:[%s965 + $0x8] sm:$0xf]
  %v969 = vld [vmem:[%s965 + $0xc] sm:$0xf]
  %v970 = vld [vmem:[#allocation2] sm:$0xff]
  %v975 = vunpack.c.l.b16 %v966
  %v976 = vunpack.c.l.b16 %v967
  %v977 = vunpack.c.l.b16 %v968
  %v978 = vunpack.c.l.b16 %v969
  %v979 = vpack.c.b16 %v976, %v975
  %v980 = vpack.c.b16 %v978, %v977
  %983 = vmatprep.subr.bf16.mxu0 0
  %984 = vmatpush1.bf16.msra.mxu0 0
  %985 = vmatprep.subr.bf16.mxu0 0
  %986 = vmatpush1.bf16.msra.mxu0 0
  %987 = vmatprep.subr.bf16.mxu0 0
  %988 = vmatpush1.bf16.msra.mxu0 0
  %989 = vmatprep.subr.bf16.mxu0 0
  %990 = vmatpush1.bf16.msra.mxu0 0
  %991 = vmatprep.subr.bf16.mxu0 0
  %992 = vmatpush1.bf16.msra.mxu0 0
  %993 = vmatprep.subr.bf16.mxu0 0
  %994 = vmatpush1.bf16.msra.mxu0 0
  %995 = vmatprep.subr.bf16.mxu0 0
  %996 = vmatpush1.bf16.msra.mxu0 %v980
  %997 = vmatprep.subr.bf16.mxu0 0
  %998 = vmatpush1.bf16.msra.mxu0 %v979
  %999 = vmatprep.subr.bf16.mxu0 0
  %1000 = vmatpush2.bf16.msra.mxu0 0
  %1001 = vmatprep.subr.bf16.mxu0 0
  %1002 = vmatpush2.bf16.msra.mxu0 0
  %1003 = vmatprep.subr.bf16.mxu0 0
  %1004 = vmatpush2.bf16.msra.mxu0 0
  %1005 = vmatprep.subr.bf16.mxu0 0
  %1006 = vmatpush2.bf16.msra.mxu0 0
  %1007 = vmatprep.subr.bf16.mxu0 0
  %1008 = vmatpush2.bf16.msra.mxu0 0
  %1009 = vmatprep.subr.bf16.mxu0 0
  %1010 = vmatpush2.bf16.msra.mxu0 0
  %1011 = vmatprep.subr.bf16.mxu0 0
  %1012 = vmatpush2.bf16.msra.mxu0 0
  %1013 = vmatprep.subr.bf16.mxu0 0
  %1014 = vmatpush2.bf16.msra.mxu0 0
  %1015 = vmatprep.mubr.bf16.mxu0 0
  %1016 = vmatmul.mubr.bf16.gmra.mxu0 %v187
  %v1017 = vpop.f32.mrf.mxu0
  %v1018 = vadd.f32 0.0, %v1017
  %v1019 = vpop.f32.mrf.mxu0
  %v1020 = vpop.f32.mrf.mxu0
  %v1021 = vpop.f32.mrf.mxu0
  %1022 = vdwg.mxu0
  %v1023 = vadd.f32 %v970, %v1018
  %v1024 = vxor.u32 %v1023, 2147483648
  %v1025 = vmul.f32 %v1024, 1.442695
  %v1026 = vpow.pop %v1025
  %v1027 = vadd.f32 %v1026, 1.0
  %v1028 = vrcp.pop %v1027
  %v1029 = vmul.f32 1.0, %v1028
  %v1030 = vtanh.pop %v1023
  %v1031 = vmul.f32 %v1029, 0.0
  %1033 = vrot.lane.b32.xlu0 %v1030, 32
  %v1034 = vpop.permute.xlu0 %1033
  %v1036 = vmul.f32 %v1029, %v1034
  %1038 = vrot.lane.b32.xlu0 %v1036, 32
  %v1039 = vpop.permute.xlu0 %1038
  %v1041 = vadd.f32 %v1031, %v1039
  %v1042 = vtanh.pop %v1041
  %1044 = vrot.lane.b32.xlu0 %v1042, 32
  %v1045 = vpop.permute.xlu0 %1044
  %v1047 = vmul.f32 %v1029, %v1045
  %1049 = vrot.lane.b32.xlu0 %v1047, 64
  %v1050 = vpop.permute.xlu0 %1049
  %1052 = vst.msk [vmem:[#allocation3] sm:$0xff] %vm83, %v1050
  %v1053 = vld [vmem:[%s259] sm:$0xff]
  %v1054 = vpack.c.bf16 %v1047, %v1047
  %1056 = vrot.lane.b32.xlu0 %v1054, 64
  %v1057 = vpop.permute.xlu0 %1056
  %v1059 = vsel %vm83, %v1057, 0
  %1061 = vmatprep.subr.bf16.mxu0 0
  %1062 = vmatpush1.bf16.msra.mxu0 0
  %1063 = vmatprep.subr.bf16.mxu0 0
  %1064 = vmatpush1.bf16.msra.mxu0 0
  %1065 = vmatprep.subr.bf16.mxu0 0
  %1066 = vmatpush1.bf16.msra.mxu0 0
  %1067 = vmatprep.subr.bf16.mxu0 0
  %1068 = vmatpush1.bf16.msra.mxu0 0
  %1069 = vmatprep.subr.bf16.mxu0 0
  %1070 = vmatpush1.bf16.msra.mxu0 0
  %1071 = vmatprep.subr.bf16.mxu0 0
  %1072 = vmatpush1.bf16.msra.mxu0 0
  %1073 = vmatprep.subr.bf16.mxu0 0
  %1074 = vmatpush1.bf16.msra.mxu0 %v980
  %1075 = vmatprep.subr.bf16.mxu0 0
  %1076 = vmatpush1.bf16.msra.mxu0 %v979
  %1077 = vmatprep.subr.bf16.mxu0 0
  %1078 = vmatpush2.bf16.msra.mxu0 0
  %1079 = vmatprep.subr.bf16.mxu0 0
  %1080 = vmatpush2.bf16.msra.mxu0 0
  %1081 = vmatprep.subr.bf16.mxu0 0
  %1082 = vmatpush2.bf16.msra.mxu0 0
  %1083 = vmatprep.subr.bf16.mxu0 0
  %1084 = vmatpush2.bf16.msra.mxu0 0
  %1085 = vmatprep.subr.bf16.mxu0 0
  %1086 = vmatpush2.bf16.msra.mxu0 0
  %1087 = vmatprep.subr.bf16.mxu0 0
  %1088 = vmatpush2.bf16.msra.mxu0 0
  %1089 = vmatprep.subr.bf16.mxu0 0
  %1090 = vmatpush2.bf16.msra.mxu0 0
  %1091 = vmatprep.subr.bf16.mxu0 0
  %1092 = vmatpush2.bf16.msra.mxu0 0
  %1093 = vmatprep.mubr.bf16.mxu0 0
  %1094 = vmatmul.mubr.bf16.gmra.mxu0 %v1059
  %v1095 = vpop.f32.mrf.mxu0
  %v1096 = vadd.f32 0.0, %v1095
  %v1097 = vpop.f32.mrf.mxu0
  %v1098 = vpop.f32.mrf.mxu0
  %v1099 = vpop.f32.mrf.mxu0
  %1100 = vdwg.mxu0
  %v1101 = vadd.f32 %v1053, %v1096
  %v1102 = vxor.u32 %v1101, 2147483648
  %v1103 = vmul.f32 %v1102, 1.442695
  %v1104 = vpow.pop %v1103
  %v1105 = vadd.f32 %v1104, 1.0
  %v1106 = vrcp.pop %v1105
  %v1107 = vmul.f32 1.0, %v1106
  %v1108 = vtanh.pop %v1101
  %v1109 = vmul.f32 %v1107, %v1041
  %1111 = vrot.lane.b32.xlu0 %v1108, 32
  %v1112 = vpop.permute.xlu0 %1111
  %v1114 = vmul.f32 %v1107, %v1112
  %1116 = vrot.lane.b32.xlu0 %v1114, 32
  %v1117 = vpop.permute.xlu0 %1116
  %v1119 = vadd.f32 %v1109, %v1117
  %v1120 = vtanh.pop %v1119
  %1122 = vrot.lane.b32.xlu0 %v1120, 32
  %v1123 = vpop.permute.xlu0 %1122
  %v1125 = vmul.f32 %v1107, %v1123
  %1127 = vrot.lane.b32.xlu0 %v1125, 64
  %v1128 = vpop.permute.xlu0 %1127
  %1130 = vst.msk [vmem:[%s337] sm:$0xff] %vm83, %v1128
  %v1131 = vld [vmem:[%s339] sm:$0xff]
  %v1132 = vpack.c.bf16 %v1125, %v1125
  %1134 = vrot.lane.b32.xlu0 %v1132, 64
  %v1135 = vpop.permute.xlu0 %1134
  %v1137 = vsel %vm83, %v1135, 0
  %1139 = vmatprep.subr.bf16.mxu0 0
  %1140 = vmatpush1.bf16.msra.mxu0 0
  %1141 = vmatprep.subr.bf16.mxu0 0
  %1142 = vmatpush1.bf16.msra.mxu0 0
  %1143 = vmatprep.subr.bf16.mxu0 0
  %1144 = vmatpush1.bf16.msra.mxu0 0
  %1145 = vmatprep.subr.bf16.mxu0 0
  %1146 = vmatpush1.bf16.msra.mxu0 0
  %1147 = vmatprep.subr.bf16.mxu0 0
  %1148 = vmatpush1.bf16.msra.mxu0 0
  %1149 = vmatprep.subr.bf16.mxu0 0
  %1150 = vmatpush1.bf16.msra.mxu0 0
  %1151 = vmatprep.subr.bf16.mxu0 0
  %1152 = vmatpush1.bf16.msra.mxu0 %v980
  %1153 = vmatprep.subr.bf16.mxu0 0
  %1154 = vmatpush1.bf16.msra.mxu0 %v979
  %1155 = vmatprep.subr.bf16.mxu0 0
  %1156 = vmatpush2.bf16.msra.mxu0 0
  %1157 = vmatprep.subr.bf16.mxu0 0
  %1158 = vmatpush2.bf16.msra.mxu0 0
  %1159 = vmatprep.subr.bf16.mxu0 0
  %1160 = vmatpush2.bf16.msra.mxu0 0
  %1161 = vmatprep.subr.bf16.mxu0 0
  %1162 = vmatpush2.bf16.msra.mxu0 0
  %1163 = vmatprep.subr.bf16.mxu0 0
  %1164 = vmatpush2.bf16.msra.mxu0 0
  %1165 = vmatprep.subr.bf16.mxu0 0
  %1166 = vmatpush2.bf16.msra.mxu0 0
  %1167 = vmatprep.subr.bf16.mxu0 0
  %1168 = vmatpush2.bf16.msra.mxu0 0
  %1169 = vmatprep.subr.bf16.mxu0 0
  %1170 = vmatpush2.bf16.msra.mxu0 0
  %1171 = vmatprep.mubr.bf16.mxu0 0
  %1172 = vmatmul.mubr.bf16.gmra.mxu0 %v1137
  %v1173 = vpop.f32.mrf.mxu0
  %v1174 = vadd.f32 0.0, %v1173
  %v1175 = vpop.f32.mrf.mxu0
  %v1176 = vpop.f32.mrf.mxu0
  %v1177 = vpop.f32.mrf.mxu0
  %1178 = vdwg.mxu0
  %v1179 = vadd.f32 %v1131, %v1174
  %v1180 = vxor.u32 %v1179, 2147483648
  %v1181 = vmul.f32 %v1180, 1.442695
  %v1182 = vpow.pop %v1181
  %v1183 = vadd.f32 %v1182, 1.0
  %v1184 = vrcp.pop %v1183
  %v1185 = vmul.f32 1.0, %v1184
  %v1186 = vtanh.pop %v1179
  %v1187 = vmul.f32 %v1185, %v1119
  %1189 = vrot.lane.b32.xlu0 %v1186, 32
  %v1190 = vpop.permute.xlu0 %1189
  %v1192 = vmul.f32 %v1185, %v1190
  %1194 = vrot.lane.b32.xlu0 %v1192, 32
  %v1195 = vpop.permute.xlu0 %1194
  %v1197 = vadd.f32 %v1187, %v1195
  %v1198 = vtanh.pop %v1197
  %1200 = vrot.lane.b32.xlu0 %v1198, 32
  %v1201 = vpop.permute.xlu0 %1200
  %v1203 = vmul.f32 %v1185, %v1201
  %1205 = vrot.lane.b32.xlu0 %v1203, 64
  %v1206 = vpop.permute.xlu0 %1205
  %1208 = vst.msk [vmem:[%s417] sm:$0xff] %vm83, %v1206
  %v1209 = vld [vmem:[%s419] sm:$0xff]
  %v1210 = vpack.c.bf16 %v1203, %v1203
  %1212 = vrot.lane.b32.xlu0 %v1210, 64
  %v1213 = vpop.permute.xlu0 %1212
  %v1215 = vsel %vm83, %v1213, 0
  %1217 = vmatprep.subr.bf16.mxu0 0
  %1218 = vmatpush1.bf16.msra.mxu0 0
  %1219 = vmatprep.subr.bf16.mxu0 0
  %1220 = vmatpush1.bf16.msra.mxu0 0
  %1221 = vmatprep.subr.bf16.mxu0 0
  %1222 = vmatpush1.bf16.msra.mxu0 0
  %1223 = vmatprep.subr.bf16.mxu0 0
  %1224 = vmatpush1.bf16.msra.mxu0 0
  %1225 = vmatprep.subr.bf16.mxu0 0
  %1226 = vmatpush1.bf16.msra.mxu0 0
  %1227 = vmatprep.subr.bf16.mxu0 0
  %1228 = vmatpush1.bf16.msra.mxu0 0
  %1229 = vmatprep.subr.bf16.mxu0 0
  %1230 = vmatpush1.bf16.msra.mxu0 %v980
  %1231 = vmatprep.subr.bf16.mxu0 0
  %1232 = vmatpush1.bf16.msra.mxu0 %v979
  %1233 = vmatprep.subr.bf16.mxu0 0
  %1234 = vmatpush2.bf16.msra.mxu0 0
  %1235 = vmatprep.subr.bf16.mxu0 0
  %1236 = vmatpush2.bf16.msra.mxu0 0
  %1237 = vmatprep.subr.bf16.mxu0 0
  %1238 = vmatpush2.bf16.msra.mxu0 0
  %1239 = vmatprep.subr.bf16.mxu0 0
  %1240 = vmatpush2.bf16.msra.mxu0 0
  %1241 = vmatprep.subr.bf16.mxu0 0
  %1242 = vmatpush2.bf16.msra.mxu0 0
  %1243 = vmatprep.subr.bf16.mxu0 0
  %1244 = vmatpush2.bf16.msra.mxu0 0
  %1245 = vmatprep.subr.bf16.mxu0 0
  %1246 = vmatpush2.bf16.msra.mxu0 0
  %1247 = vmatprep.subr.bf16.mxu0 0
  %1248 = vmatpush2.bf16.msra.mxu0 0
  %1249 = vmatprep.mubr.bf16.mxu0 0
  %1250 = vmatmul.mubr.bf16.gmra.mxu0 %v1215
  %v1251 = vpop.f32.mrf.mxu0
  %v1252 = vadd.f32 0.0, %v1251
  %v1253 = vpop.f32.mrf.mxu0
  %v1254 = vpop.f32.mrf.mxu0
  %v1255 = vpop.f32.mrf.mxu0
  %1256 = vdwg.mxu0
  %v1257 = vadd.f32 %v1209, %v1252
  %v1258 = vxor.u32 %v1257, 2147483648
  %v1259 = vmul.f32 %v1258, 1.442695
  %v1260 = vpow.pop %v1259
  %v1261 = vadd.f32 %v1260, 1.0
  %v1262 = vrcp.pop %v1261
  %v1263 = vmul.f32 1.0, %v1262
  %v1264 = vtanh.pop %v1257
  %v1265 = vmul.f32 %v1263, %v1197
  %1267 = vrot.lane.b32.xlu0 %v1264, 32
  %v1268 = vpop.permute.xlu0 %1267
  %v1270 = vmul.f32 %v1263, %v1268
  %1272 = vrot.lane.b32.xlu0 %v1270, 32
  %v1273 = vpop.permute.xlu0 %1272
  %v1275 = vadd.f32 %v1265, %v1273
  %v1276 = vtanh.pop %v1275
  %1278 = vrot.lane.b32.xlu0 %v1276, 32
  %v1279 = vpop.permute.xlu0 %1278
  %v1281 = vmul.f32 %v1263, %v1279
  %1283 = vrot.lane.b32.xlu0 %v1281, 64
  %v1284 = vpop.permute.xlu0 %1283
  %1286 = vst.msk [vmem:[%s497] sm:$0xff] %vm83, %v1284
  %v1287 = vld [vmem:[%s499] sm:$0xff]
  %v1288 = vpack.c.bf16 %v1281, %v1281
  %1290 = vrot.lane.b32.xlu0 %v1288, 64
  %v1291 = vpop.permute.xlu0 %1290
  %v1293 = vsel %vm83, %v1291, 0
  %1295 = vmatprep.subr.bf16.mxu0 0
  %1296 = vmatpush1.bf16.msra.mxu0 0
  %1297 = vmatprep.subr.bf16.mxu0 0
  %1298 = vmatpush1.bf16.msra.mxu0 0
  %1299 = vmatprep.subr.bf16.mxu0 0
  %1300 = vmatpush1.bf16.msra.mxu0 0
  %1301 = vmatprep.subr.bf16.mxu0 0
  %1302 = vmatpush1.bf16.msra.mxu0 0
  %1303 = vmatprep.subr.bf16.mxu0 0
  %1304 = vmatpush1.bf16.msra.mxu0 0
  %1305 = vmatprep.subr.bf16.mxu0 0
  %1306 = vmatpush1.bf16.msra.mxu0 0
  %1307 = vmatprep.subr.bf16.mxu0 0
  %1308 = vmatpush1.bf16.msra.mxu0 %v980
  %1309 = vmatprep.subr.bf16.mxu0 0
  %1310 = vmatpush1.bf16.msra.mxu0 %v979
  %1311 = vmatprep.subr.bf16.mxu0 0
  %1312 = vmatpush2.bf16.msra.mxu0 0
  %1313 = vmatprep.subr.bf16.mxu0 0
  %1314 = vmatpush2.bf16.msra.mxu0 0
  %1315 = vmatprep.subr.bf16.mxu0 0
  %1316 = vmatpush2.bf16.msra.mxu0 0
  %1317 = vmatprep.subr.bf16.mxu0 0
  %1318 = vmatpush2.bf16.msra.mxu0 0
  %1319 = vmatprep.subr.bf16.mxu0 0
  %1320 = vmatpush2.bf16.msra.mxu0 0
  %1321 = vmatprep.subr.bf16.mxu0 0
  %1322 = vmatpush2.bf16.msra.mxu0 0
  %1323 = vmatprep.subr.bf16.mxu0 0
  %1324 = vmatpush2.bf16.msra.mxu0 0
  %1325 = vmatprep.subr.bf16.mxu0 0
  %1326 = vmatpush2.bf16.msra.mxu0 0
  %1327 = vmatprep.mubr.bf16.mxu0 0
  %1328 = vmatmul.mubr.bf16.gmra.mxu0 %v1293
  %v1329 = vpop.f32.mrf.mxu0
  %v1330 = vadd.f32 0.0, %v1329
  %v1331 = vpop.f32.mrf.mxu0
  %v1332 = vpop.f32.mrf.mxu0
  %v1333 = vpop.f32.mrf.mxu0
  %1334 = vdwg.mxu0
  %v1335 = vadd.f32 %v1287, %v1330
  %v1336 = vxor.u32 %v1335, 2147483648
  %v1337 = vmul.f32 %v1336, 1.442695
  %v1338 = vpow.pop %v1337
  %v1339 = vadd.f32 %v1338, 1.0
  %v1340 = vrcp.pop %v1339
  %v1341 = vmul.f32 1.0, %v1340
  %v1342 = vtanh.pop %v1335
  %v1343 = vmul.f32 %v1341, %v1275
  %1345 = vrot.lane.b32.xlu0 %v1342, 32
  %v1346 = vpop.permute.xlu0 %1345
  %v1348 = vmul.f32 %v1341, %v1346
  %1350 = vrot.lane.b32.xlu0 %v1348, 32
  %v1351 = vpop.permute.xlu0 %1350
  %v1353 = vadd.f32 %v1343, %v1351
  %v1354 = vtanh.pop %v1353
  %1356 = vrot.lane.b32.xlu0 %v1354, 32
  %v1357 = vpop.permute.xlu0 %1356
  %v1359 = vmul.f32 %v1341, %v1357
  %1361 = vrot.lane.b32.xlu0 %v1359, 64
  %v1362 = vpop.permute.xlu0 %1361
  %1364 = vst.msk [vmem:[%s577] sm:$0xff] %vm83, %v1362
  %v1365 = vld [vmem:[%s579] sm:$0xff]
  %v1366 = vpack.c.bf16 %v1359, %v1359
  %1368 = vrot.lane.b32.xlu0 %v1366, 64
  %v1369 = vpop.permute.xlu0 %1368
  %v1371 = vsel %vm83, %v1369, 0
  %1373 = vmatprep.subr.bf16.mxu0 0
  %1374 = vmatpush1.bf16.msra.mxu0 0
  %1375 = vmatprep.subr.bf16.mxu0 0
  %1376 = vmatpush1.bf16.msra.mxu0 0
  %1377 = vmatprep.subr.bf16.mxu0 0
  %1378 = vmatpush1.bf16.msra.mxu0 0
  %1379 = vmatprep.subr.bf16.mxu0 0
  %1380 = vmatpush1.bf16.msra.mxu0 0
  %1381 = vmatprep.subr.bf16.mxu0 0
  %1382 = vmatpush1.bf16.msra.mxu0 0
  %1383 = vmatprep.subr.bf16.mxu0 0
  %1384 = vmatpush1.bf16.msra.mxu0 0
  %1385 = vmatprep.subr.bf16.mxu0 0
  %1386 = vmatpush1.bf16.msra.mxu0 %v980
  %1387 = vmatprep.subr.bf16.mxu0 0
  %1388 = vmatpush1.bf16.msra.mxu0 %v979
  %1389 = vmatprep.subr.bf16.mxu0 0
  %1390 = vmatpush2.bf16.msra.mxu0 0
  %1391 = vmatprep.subr.bf16.mxu0 0
  %1392 = vmatpush2.bf16.msra.mxu0 0
  %1393 = vmatprep.subr.bf16.mxu0 0
  %1394 = vmatpush2.bf16.msra.mxu0 0
  %1395 = vmatprep.subr.bf16.mxu0 0
  %1396 = vmatpush2.bf16.msra.mxu0 0
  %1397 = vmatprep.subr.bf16.mxu0 0
  %1398 = vmatpush2.bf16.msra.mxu0 0
  %1399 = vmatprep.subr.bf16.mxu0 0
  %1400 = vmatpush2.bf16.msra.mxu0 0
  %1401 = vmatprep.subr.bf16.mxu0 0
  %1402 = vmatpush2.bf16.msra.mxu0 0
  %1403 = vmatprep.subr.bf16.mxu0 0
  %1404 = vmatpush2.bf16.msra.mxu0 0
  %1405 = vmatprep.mubr.bf16.mxu0 0
  %1406 = vmatmul.mubr.bf16.gmra.mxu0 %v1371
  %v1407 = vpop.f32.mrf.mxu0
  %v1408 = vadd.f32 0.0, %v1407
  %v1409 = vpop.f32.mrf.mxu0
  %v1410 = vpop.f32.mrf.mxu0
  %v1411 = vpop.f32.mrf.mxu0
  %1412 = vdwg.mxu0
  %v1413 = vadd.f32 %v1365, %v1408
  %v1414 = vxor.u32 %v1413, 2147483648
  %v1415 = vmul.f32 %v1414, 1.442695
  %v1416 = vpow.pop %v1415
  %v1417 = vadd.f32 %v1416, 1.0
  %v1418 = vrcp.pop %v1417
  %v1419 = vmul.f32 1.0, %v1418
  %v1420 = vtanh.pop %v1413
  %v1421 = vmul.f32 %v1419, %v1353
  %1423 = vrot.lane.b32.xlu0 %v1420, 32
  %v1424 = vpop.permute.xlu0 %1423
  %v1426 = vmul.f32 %v1419, %v1424
  %1428 = vrot.lane.b32.xlu0 %v1426, 32
  %v1429 = vpop.permute.xlu0 %1428
  %v1431 = vadd.f32 %v1421, %v1429
  %v1432 = vtanh.pop %v1431
  %1434 = vrot.lane.b32.xlu0 %v1432, 32
  %v1435 = vpop.permute.xlu0 %1434
  %v1437 = vmul.f32 %v1419, %v1435
  %1439 = vrot.lane.b32.xlu0 %v1437, 64
  %v1440 = vpop.permute.xlu0 %1439
  %1442 = vst.msk [vmem:[%s657] sm:$0xff] %vm83, %v1440
  %v1443 = vld [vmem:[%s659] sm:$0xff]
  %v1444 = vpack.c.bf16 %v1437, %v1437
  %1446 = vrot.lane.b32.xlu0 %v1444, 64
  %v1447 = vpop.permute.xlu0 %1446
  %v1449 = vsel %vm83, %v1447, 0
  %1451 = vmatprep.subr.bf16.mxu0 0
  %1452 = vmatpush1.bf16.msra.mxu0 0
  %1453 = vmatprep.subr.bf16.mxu0 0
  %1454 = vmatpush1.bf16.msra.mxu0 0
  %1455 = vmatprep.subr.bf16.mxu0 0
  %1456 = vmatpush1.bf16.msra.mxu0 0
  %1457 = vmatprep.subr.bf16.mxu0 0
  %1458 = vmatpush1.bf16.msra.mxu0 0
  %1459 = vmatprep.subr.bf16.mxu0 0
  %1460 = vmatpush1.bf16.msra.mxu0 0
  %1461 = vmatprep.subr.bf16.mxu0 0
  %1462 = vmatpush1.bf16.msra.mxu0 0
  %1463 = vmatprep.subr.bf16.mxu0 0
  %1464 = vmatpush1.bf16.msra.mxu0 %v980
  %1465 = vmatprep.subr.bf16.mxu0 0
  %1466 = vmatpush1.bf16.msra.mxu0 %v979
  %1467 = vmatprep.subr.bf16.mxu0 0
  %1468 = vmatpush2.bf16.msra.mxu0 0
  %1469 = vmatprep.subr.bf16.mxu0 0
  %1470 = vmatpush2.bf16.msra.mxu0 0
  %1471 = vmatprep.subr.bf16.mxu0 0
  %1472 = vmatpush2.bf16.msra.mxu0 0
  %1473 = vmatprep.subr.bf16.mxu0 0
  %1474 = vmatpush2.bf16.msra.mxu0 0
  %1475 = vmatprep.subr.bf16.mxu0 0
  %1476 = vmatpush2.bf16.msra.mxu0 0
  %1477 = vmatprep.subr.bf16.mxu0 0
  %1478 = vmatpush2.bf16.msra.mxu0 0
  %1479 = vmatprep.subr.bf16.mxu0 0
  %1480 = vmatpush2.bf16.msra.mxu0 0
  %1481 = vmatprep.subr.bf16.mxu0 0
  %1482 = vmatpush2.bf16.msra.mxu0 0
  %1483 = vmatprep.mubr.bf16.mxu0 0
  %1484 = vmatmul.mubr.bf16.gmra.mxu0 %v1449
  %v1485 = vpop.f32.mrf.mxu0
  %v1486 = vadd.f32 0.0, %v1485
  %v1487 = vpop.f32.mrf.mxu0
  %v1488 = vpop.f32.mrf.mxu0
  %v1489 = vpop.f32.mrf.mxu0
  %1490 = vdwg.mxu0
  %v1491 = vadd.f32 %v1443, %v1486
  %v1492 = vxor.u32 %v1491, 2147483648
  %v1493 = vmul.f32 %v1492, 1.442695
  %v1494 = vpow.pop %v1493
  %v1495 = vadd.f32 %v1494, 1.0
  %v1496 = vrcp.pop %v1495
  %v1497 = vmul.f32 1.0, %v1496
  %v1498 = vtanh.pop %v1491
  %v1499 = vmul.f32 %v1497, %v1431
  %1501 = vrot.lane.b32.xlu0 %v1498, 32
  %v1502 = vpop.permute.xlu0 %1501
  %v1504 = vmul.f32 %v1497, %v1502
  %1506 = vrot.lane.b32.xlu0 %v1504, 32
  %v1507 = vpop.permute.xlu0 %1506
  %v1509 = vadd.f32 %v1499, %v1507
  %v1510 = vtanh.pop %v1509
  %1512 = vrot.lane.b32.xlu0 %v1510, 32
  %v1513 = vpop.permute.xlu0 %1512
  %v1515 = vmul.f32 %v1497, %v1513
  %1517 = vrot.lane.b32.xlu0 %v1515, 64
  %v1518 = vpop.permute.xlu0 %1517
  %1520 = vst.msk [vmem:[%s737] sm:$0xff] %vm83, %v1518
  %v1521 = vld [vmem:[%s739] sm:$0xff]
  %v1522 = vpack.c.bf16 %v1515, %v1515
  %1524 = vrot.lane.b32.xlu0 %v1522, 64
  %v1525 = vpop.permute.xlu0 %1524
  %v1527 = vsel %vm83, %v1525, 0
  %1529 = vmatprep.subr.bf16.mxu0 0
  %1530 = vmatpush1.bf16.msra.mxu0 0
  %1531 = vmatprep.subr.bf16.mxu0 0
  %1532 = vmatpush1.bf16.msra.mxu0 0
  %1533 = vmatprep.subr.bf16.mxu0 0
  %1534 = vmatpush1.bf16.msra.mxu0 0
  %1535 = vmatprep.subr.bf16.mxu0 0
  %1536 = vmatpush1.bf16.msra.mxu0 0
  %1537 = vmatprep.subr.bf16.mxu0 0
  %1538 = vmatpush1.bf16.msra.mxu0 0
  %1539 = vmatprep.subr.bf16.mxu0 0
  %1540 = vmatpush1.bf16.msra.mxu0 0
  %1541 = vmatprep.subr.bf16.mxu0 0
  %1542 = vmatpush1.bf16.msra.mxu0 %v980
  %1543 = vmatprep.subr.bf16.mxu0 0
  %1544 = vmatpush1.bf16.msra.mxu0 %v979
  %1545 = vmatprep.subr.bf16.mxu0 0
  %1546 = vmatpush2.bf16.msra.mxu0 0
  %1547 = vmatprep.subr.bf16.mxu0 0
  %1548 = vmatpush2.bf16.msra.mxu0 0
  %1549 = vmatprep.subr.bf16.mxu0 0
  %1550 = vmatpush2.bf16.msra.mxu0 0
  %1551 = vmatprep.subr.bf16.mxu0 0
  %1552 = vmatpush2.bf16.msra.mxu0 0
  %1553 = vmatprep.subr.bf16.mxu0 0
  %1554 = vmatpush2.bf16.msra.mxu0 0
  %1555 = vmatprep.subr.bf16.mxu0 0
  %1556 = vmatpush2.bf16.msra.mxu0 0
  %1557 = vmatprep.subr.bf16.mxu0 0
  %1558 = vmatpush2.bf16.msra.mxu0 0
  %1559 = vmatprep.subr.bf16.mxu0 0
  %1560 = vmatpush2.bf16.msra.mxu0 0
  %1561 = vmatprep.mubr.bf16.mxu0 0
  %1562 = vmatmul.mubr.bf16.gmra.mxu0 %v1527
  %v1563 = vpop.f32.mrf.mxu0
  %v1564 = vadd.f32 0.0, %v1563
  %v1565 = vpop.f32.mrf.mxu0
  %v1566 = vpop.f32.mrf.mxu0
  %v1567 = vpop.f32.mrf.mxu0
  %1568 = vdwg.mxu0
  %v1569 = vadd.f32 %v1521, %v1564
  %v1570 = vxor.u32 %v1569, 2147483648
  %v1571 = vmul.f32 %v1570, 1.442695
  %v1572 = vpow.pop %v1571
  %v1573 = vadd.f32 %v1572, 1.0
  %v1574 = vrcp.pop %v1573
  %v1575 = vmul.f32 1.0, %v1574
  %v1576 = vtanh.pop %v1569
  %v1577 = vmul.f32 %v1575, %v1509
  %1579 = vrot.lane.b32.xlu0 %v1576, 32
  %v1580 = vpop.permute.xlu0 %1579
  %v1582 = vmul.f32 %v1575, %v1580
  %1584 = vrot.lane.b32.xlu0 %v1582, 32
  %v1585 = vpop.permute.xlu0 %1584
  %v1587 = vadd.f32 %v1577, %v1585
  %v1588 = vtanh.pop %v1587
  %1590 = vrot.lane.b32.xlu0 %v1588, 32
  %v1591 = vpop.permute.xlu0 %1590
  %v1593 = vmul.f32 %v1575, %v1591
  %1595 = vrot.lane.b32.xlu0 %v1593, 64
  %v1596 = vpop.permute.xlu0 %1595
  %1598 = vst.msk [vmem:[%s817] sm:$0xff] %vm83, %v1596
  %v1599 = vld [vmem:[#allocation3] sm:$0xff]
  %v1600 = vld [vmem:[#allocation3 + $0x8] sm:$0xff]
  %v1601 = vld [vmem:[#allocation3 + $0x10] sm:$0xff]
  %v1602 = vld [vmem:[#allocation3 + $0x18] sm:$0xff]
  %v1603 = vld [vmem:[#allocation3 + $0x20] sm:$0xff]
  %v1604 = vld [vmem:[#allocation3 + $0x28] sm:$0xff]
  %v1605 = vld [vmem:[#allocation3 + $0x30] sm:$0xff]
  %v1606 = vld [vmem:[#allocation3 + $0x38] sm:$0xff]
  %v1607 = vpack.c.bf16 %v1599, %v1599
  %v1608 = vpack.c.bf16 %v1600, %v1600
  %v1609 = vpack.c.bf16 %v1601, %v1601
  %v1610 = vpack.c.bf16 %v1602, %v1602
  %v1611 = vpack.c.bf16 %v1603, %v1603
  %v1612 = vpack.c.bf16 %v1604, %v1604
  %v1613 = vpack.c.bf16 %v1605, %v1605
  %v1614 = vpack.c.bf16 %v1606, %v1606
  %v1615 = vld [vmem:[%s4] sm:$0xf]
  %v1616 = vld [vmem:[%s4 + $0x4] sm:$0xf]
  %v1617 = vld [vmem:[%s4 + $0x8] sm:$0xf]
  %v1618 = vld [vmem:[%s4 + $0xc] sm:$0xf]
  %v1619 = vld [vmem:[%s5] sm:$0x1]
  %v1621 = vlaneseq
  %v1622 = vshrl.u32 %v1621, 7
  %v1623 = vsub.s32 0, %v1622
  %v1624 = vrot.slane %v1619, %v1623
  %v1634 = vunpack.c.l.b16 %v1607
  %v1635 = vunpack.c.l.b16 %v1608
  %v1636 = vunpack.c.l.b16 %v1609
  %v1637 = vunpack.c.l.b16 %v1610
  %v1638 = vunpack.c.l.b16 %v1611
  %v1639 = vunpack.c.l.b16 %v1612
  %v1640 = vunpack.c.l.b16 %v1613
  %v1641 = vunpack.c.l.b16 %v1614
  %v1642 = vpack.c.b16 %v1635, %v1634
  %v1643 = vpack.c.b16 %v1637, %v1636
  %v1644 = vpack.c.b16 %v1639, %v1638
  %v1645 = vpack.c.b16 %v1641, %v1640
  %v1650 = vunpack.c.l.b16 %v1615
  %v1651 = vunpack.c.l.b16 %v1616
  %v1652 = vunpack.c.l.b16 %v1617
  %v1653 = vunpack.c.l.b16 %v1618
  %v1654 = vpack.c.b16 %v1651, %v1650
  %v1655 = vpack.c.b16 %v1653, %v1652
  %v1659 = vsel %vm83, %v1642, 0
  %v1662 = vsel %vm83, %v1643, 0
  %v1665 = vsel %vm83, %v1644, 0
  %v1668 = vsel %vm83, %v1645, 0
  %1670 = vmatprep.subr.bf16.mxu0 0
  %1671 = vmatpush1.bf16.msra.mxu0 0
  %1672 = vmatprep.subr.bf16.mxu0 0
  %1673 = vmatpush1.bf16.msra.mxu0 0
  %1674 = vmatprep.subr.bf16.mxu0 0
  %1675 = vmatpush1.bf16.msra.mxu0 0
  %1676 = vmatprep.subr.bf16.mxu0 0
  %1677 = vmatpush1.bf16.msra.mxu0 0
  %1678 = vmatprep.subr.bf16.mxu0 0
  %1679 = vmatpush1.bf16.msra.mxu0 0
  %1680 = vmatprep.subr.bf16.mxu0 0
  %1681 = vmatpush1.bf16.msra.mxu0 0
  %1682 = vmatprep.subr.bf16.mxu0 0
  %1683 = vmatpush1.bf16.msra.mxu0 %v1655
  %1684 = vmatprep.subr.bf16.mxu0 0
  %1685 = vmatpush1.bf16.msra.mxu0 %v1654
  %1686 = vmatprep.subr.bf16.mxu0 0
  %1687 = vmatpush2.bf16.msra.mxu0 0
  %1688 = vmatprep.subr.bf16.mxu0 0
  %1689 = vmatpush2.bf16.msra.mxu0 0
  %1690 = vmatprep.subr.bf16.mxu0 0
  %1691 = vmatpush2.bf16.msra.mxu0 0
  %1692 = vmatprep.subr.bf16.mxu0 0
  %1693 = vmatpush2.bf16.msra.mxu0 0
  %1694 = vmatprep.subr.bf16.mxu0 0
  %1695 = vmatpush2.bf16.msra.mxu0 0
  %1696 = vmatprep.subr.bf16.mxu0 0
  %1697 = vmatpush2.bf16.msra.mxu0 0
  %1698 = vmatprep.subr.bf16.mxu0 0
  %1699 = vmatpush2.bf16.msra.mxu0 0
  %1700 = vmatprep.subr.bf16.mxu0 0
  %1701 = vmatpush2.bf16.msra.mxu0 0
  %1702 = vmatprep.mubr.bf16.mxu0 0
  %1703 = vmatmul.mubr.bf16.gmra.mxu0 %v1659
  %v1704 = vpop.f32.mrf.mxu0
  %v1705 = vadd.f32 %v1624, %v1704
  %v1706 = vpop.f32.mrf.mxu0
  %v1707 = vpop.f32.mrf.mxu0
  %v1708 = vadd.f32 %v1624, %v1707
  %v1709 = vpop.f32.mrf.mxu0
  %1710 = vmatprep.mubr.bf16.mxu0 0
  %1711 = vmatmul.mubr.bf16.gmra.mxu0 %v1662
  %v1712 = vpop.f32.mrf.mxu0
  %v1713 = vadd.f32 %v1624, %v1712
  %v1714 = vpop.f32.mrf.mxu0
  %v1715 = vpop.f32.mrf.mxu0
  %v1716 = vadd.f32 %v1624, %v1715
  %v1717 = vpop.f32.mrf.mxu0
  %1718 = vmatprep.mubr.bf16.mxu0 0
  %1719 = vmatmul.mubr.bf16.gmra.mxu0 %v1665
  %v1720 = vpop.f32.mrf.mxu0
  %v1721 = vadd.f32 %v1624, %v1720
  %v1722 = vpop.f32.mrf.mxu0
  %v1723 = vpop.f32.mrf.mxu0
  %v1724 = vadd.f32 %v1624, %v1723
  %v1725 = vpop.f32.mrf.mxu0
  %1726 = vmatprep.mubr.bf16.mxu0 0
  %1727 = vmatmul.mubr.bf16.gmra.mxu0 %v1668
  %v1728 = vpop.f32.mrf.mxu0
  %v1729 = vadd.f32 %v1624, %v1728
  %v1730 = vpop.f32.mrf.mxu0
  %v1731 = vpop.f32.mrf.mxu0
  %v1732 = vadd.f32 %v1624, %v1731
  %v1733 = vpop.f32.mrf.mxu0
  %1734 = vdwg.mxu0
  %1735 = vst [vmem:[%s6] sm:$0xff] %v1705
  %1736 = vst [vmem:[%s6 + $0x8] sm:$0xff] %v1708
  %1737 = vst [vmem:[%s6 + $0x10] sm:$0xff] %v1713
  %1738 = vst [vmem:[%s6 + $0x18] sm:$0xff] %v1716
  %1739 = vst [vmem:[%s6 + $0x20] sm:$0xff] %v1721
  %1740 = vst [vmem:[%s6 + $0x28] sm:$0xff] %v1724
  %1741 = vst [vmem:[%s6 + $0x30] sm:$0xff] %v1729
  %1742 = vst [vmem:[%s6 + $0x38] sm:$0xff] %v1732
  // Predicated region
  $region26: #{decoder_forward.1} parent=0 // pred_check
    _
  $region27: #{decoder_forward.1} parent=0 // pred_check_branch
    %1744 = sbr.rel (0) target = $region29
  $region28: #{decoder_forward.1} parent=0 // pred_region
    _
  $region29: #{decoder_forward.1} parent=0 // pred_fallthru
    _
  // Predicated region
  $region30: #{decoder_forward.1} parent=0 // pred_check
    _
  $region31: #{decoder_forward.1} parent=0 // pred_check_branch
    %1746 = sbr.rel (0) target = $region33
  $region32: #{decoder_forward.1} parent=0 // pred_region
    _
  $region33: #{decoder_forward.1} parent=0 // pred_fallthru
    _

</llo_original>
